<compile_context>
chip_gen: v7x
topology: tpu7x:2x2x1
jax: 0.10.0
libtpu: 0.0.40
codegen_flags: <defaults>
</compile_context>

<pallas_src>
import functools

import jax
import jax.numpy as jnp
import numpy as np
from jax.experimental import pallas as pl
from jax.experimental.pallas import tpu as pltpu


def _silu(x):
    return x * jax.nn.sigmoid(x)


def _cdiv(a, b):
    return -(-a // b)


def _round_up(x, m):
    return _cdiv(x, m) * m


def _padded_bytes(shape, dtype):
    """VMEM footprint of an array including (sublane, lane) tile padding."""
    itemsize = np.dtype(dtype).itemsize
    sub = 32 // itemsize                       # 8 (f32) / 16 (bf16) / 32 (i8)
    dims = (1, 1) + tuple(int(s) for s in shape)
    lead = int(np.prod(dims[:-2]))
    return lead * _round_up(dims[-2], sub) * _round_up(dims[-1], 128) * itemsize


def _vmem_limit_bytes():
    """Generation-aware scoped-VMEM request (v7x: 64 MiB, v5e/v6e: 128 MiB)."""
    try:
        cap = int(pltpu.get_tpu_info().vmem_capacity_bytes)
    except Exception:
        cap = 64 * 1024 * 1024                 # conservative: v7x per-core VMEM
    return max(32 << 20, min((cap * 3) // 4, 100 << 20))


# ---------------------------------------------------------------------------
# Kernel
# ---------------------------------------------------------------------------
def otf_lobe_kernel(xr_ref, vr_ref,
                    w1a_ref, w2a_ref, u1xa_ref, u1va_ref, u2xa_ref, u2va_ref,
                    w1b_ref, w2b_ref, u1xb_ref, u1vb_ref, u2xb_ref, u2vb_ref,
                    g1_ref, g2_ref, bias_ref,
                    out_ref,
                    x_acc, v_acc,
                    *, D, Dh, H, O, a_rem):
    a_idx = pl.program_id(1)
    last_a = pl.num_programs(1) - 1

    # ------------- atom-sum accumulation (x_rep / v_rep .sum over atoms) ----
    @pl.when(a_idx == 0)
    def _init():
        x_acc[...] = jnp.zeros_like(x_acc)
        v_acc[...] = jnp.zeros_like(v_acc)

    def _accumulate(atom_mask):
        xr = xr_ref[...]                                   # (TN, TA, D)
        vr = vr_ref[...]                                   # (TN, TA, 3*D)
        if atom_mask is not None:                          # mask ragged tail
            xr = jnp.where(atom_mask, xr, 0)
            vr = jnp.where(atom_mask, vr, 0)
        # Sublane reduction over the atom axis, accumulated in f32 without
        # materializing an f32 copy of the whole streamed block.
        x_acc[...] += jnp.sum(xr, axis=1, dtype=jnp.float32)
        v_acc[...] += jnp.sum(vr, axis=1, dtype=jnp.float32)

    if a_rem == 0:                    # atom axis divides evenly: never mask
        _accumulate(None)
    else:
        @pl.when(a_idx != last_a)
        def _():
            _accumulate(None)

        @pl.when(a_idx == last_a)
        def _():
            ta = xr_ref.shape[1]
            valid = jax.lax.broadcasted_iota(jnp.int32, (ta, 1), 0) < a_rem
            _accumulate(valid)

    # ------------- head: once per batch tile, at the last atom tile ---------
    @pl.when(a_idx == last_a)
    def _head():
        bf16 = jnp.bfloat16
        f32 = jnp.float32
        biases = bias_ref[...]                             # (8, W) f32

        def mm(a, w_ref):
            return jnp.dot(a.astype(bf16), w_ref[...],
                           preferred_element_type=f32)

        x = x_acc[...]                                     # (TN, D)
        v = v_acc[...]                                     # (TN, 3*D)
        # Split Cartesian components (free when D % 128 == 0; rare otherwise).
        vc = [v[:, 0 * D:1 * D], v[:, 1 * D:2 * D], v[:, 2 * D:3 * D]]

        def gated_block(x, vc, w1, w2, u1x, u1v, b1, u2x, b2x, u2v, b2v,
                        scalar_act):
            # vec1 = norm(vec1_proj(v), dim=-2); vec2 = vec2_proj(v)
            vec1 = [mm(c, w1) for c in vc]
            vec2 = [mm(c, w2) for c in vc]
            vec1n = jnp.sqrt(vec1[0] * vec1[0] + vec1[1] * vec1[1]
                             + vec1[2] * vec1[2])
            # update_net(cat[x, vec1n]) with the concat split into two matmuls
            h = _silu(mm(x, u1x) + mm(vec1n, u1v) + b1)
            x_new = mm(h, u2x) + b2x
            gate = mm(h, u2v) + b2v
            v_new = [gate * c for c in vec2]
            if scalar_act:
                x_new = _silu(x_new)
            return x_new, v_new

        # EquivariantScalar.pre_reduce: two GatedEquivariantBlocks
        x, vc = gated_block(x, vc, w1a_ref, w2a_ref, u1xa_ref, u1va_ref,
                            biases[0:1, :D], u2xa_ref, biases[1:2, :Dh],
                            u2va_ref, biases[2:3, :Dh], True)
        x, vc = gated_block(x, vc, w1b_ref, w2b_ref, u1xb_ref, u1vb_ref,
                            biases[3:4, :Dh], u2xb_ref, biases[4:5, :H],
                            u2vb_ref, biases[5:6, :H], False)
        # graph_projection: Linear -> SiLU -> Linear
        h = _silu(mm(x, g1_ref) + biases[6:7, :H])
        out = mm(h, g2_ref) + biases[7:8, :O]
        out_ref[...] = out.astype(out_ref.dtype)


# ---------------------------------------------------------------------------
# Host-side packing / tiling / wrapper
# ---------------------------------------------------------------------------
_WEIGHT_ORDER = ("w1a", "w2a", "u1xa", "u1va", "u2xa", "u2va",
                 "w1b", "w2b", "u1xb", "u1vb", "u2xb", "u2vb", "g1", "g2")
_BIAS_ORDER = ("b1a", "b2xa", "b2va", "b1b", "b2xb", "b2vb", "gb1", "gb2")


def pack_params(params):
    """bf16 weights (MXU-native) + one lane-padded f32 bias table."""
    D = params["w1a"].shape[0]
    Dh = params["w2a"].shape[1]
    H = params["u2xb"].shape[1]
    O = params["g2"].shape[1]
    weights = [params[k].astype(jnp.bfloat16) for k in _WEIGHT_ORDER]
    rows = [params[k] for k in _BIAS_ORDER]
    W = _round_up(max(r.shape[1] for r in rows), 128)
    bias = jnp.zeros((len(rows), W), jnp.float32)
    for i, r in enumerate(rows):
        bias = bias.at[i, :r.shape[1]].set(r[0])
    return weights, bias, (D, Dh, H, O)


def _legalize_tile(t, full):
    """Block dims must be a multiple of 8 or equal to the full array dim."""
    t = max(1, min(int(t), int(full)))
    if t == full:
        return t
    t8 = (t // 8) * 8
    return int(full) if t8 < 8 else t8


def _pick_tiles(N, A, D, O, in_dtype, fixed_bytes, vmem_limit):
    """Largest (TN, TA) whose double-buffered streamed blocks + scratch fit."""
    budget = vmem_limit - fixed_bytes - (2 << 20)   # slack for compiler temps

    def cost(tn_, ta_):
        stream = 2 * (_padded_bytes((tn_, ta_, D), in_dtype)
                      + _padded_bytes((tn_, ta_, 3 * D), in_dtype))
        scratch = (_padded_bytes((tn_, D), jnp.float32)
                   + _padded_bytes((tn_, 3 * D), jnp.float32))
        outb = 2 * _padded_bytes((tn_, O), jnp.float32)
        return stream + scratch + outb

    n8 = _round_up(N, 8)
    # 3*TN >= ~256 keeps the (rare) head matmuls MXU-friendly, but cap so the
    # "parallel" batch axis has >= 2 blocks (v7x has 2 TensorCores per chip).
    tn = min(256, n8)
    if n8 >= 16:
        tn = min(tn, _round_up(_cdiv(n8, 2), 8))
    tn = _legalize_tile(tn, N)

    def best_ta(tn_):
        if A <= 8 or cost(tn_, A) <= budget:
            return A
        ta_ = (A // 8) * 8
        while ta_ > 8 and cost(tn_, ta_) > budget:
            ta_ = max(8, (ta_ // 2 // 8) * 8)
        return ta_

    ta = best_ta(tn)
    while cost(tn, ta) > budget and tn > 8:
        tn = _legalize_tile(max(8, (tn // 2 // 8) * 8), N)
        ta = best_ta(tn)
    return tn, ta


def otf_lobe_forward(x_rep, v_rep, params, output_dim, *, tn=None, ta=None):
    """x_rep: (N, A, D), v_rep: (N, A, 3, D); any float dtype (bf16 preferred)."""
    N, A, D = x_rep.shape
    assert v_rep.shape == (N, A, 3, D)
    weights, bias, (D_, Dh, H, O) = pack_params(params)
    assert D_ == D and O == output_dim

    # Free metadata reshape (3 and D are contiguous): streamed minor dim 3*D.
    # No host-side transpose / dtype-cast / pad passes over the big tensors.
    vr = v_rep.reshape(N, A, 3 * D)
    xr = x_rep
    in_dtype = xr.dtype

    vmem_limit = _vmem_limit_bytes()
    # Weights/bias have constant index maps (fetched once) but the pipeline
    # still reserves two buffers each; account for that in the budget.
    fixed = 2 * sum(_padded_bytes(w.shape, w.dtype) for w in weights)
    fixed += 2 * _padded_bytes(bias.shape, bias.dtype)

    tn_auto, ta_auto = _pick_tiles(N, A, D, O, in_dtype, fixed, vmem_limit)
    tn = tn_auto if tn is None else _legalize_tile(tn, N)
    ta = ta_auto if ta is None else _legalize_tile(ta, A)

    grid = (pl.cdiv(N, tn), pl.cdiv(A, ta))
    a_rem = A % ta               # valid atoms in the last atom tile (0 = exact)

    def const_spec(shape):
        zeros = (0,) * len(shape)
        return pl.BlockSpec(shape, lambda i, a, _z=zeros: _z)

    in_specs = ([pl.BlockSpec((tn, ta, D), lambda i, a: (i, a, 0)),
                 pl.BlockSpec((tn, ta, 3 * D), lambda i, a: (i, a, 0))]
                + [const_spec(w.shape) for w in weights]
                + [const_spec(bias.shape)])
    out_specs = pl.BlockSpec((tn, O), lambda i, a: (i, 0))

    kernel = functools.partial(otf_lobe_kernel, D=D, Dh=Dh, H=H, O=O,
                               a_rem=a_rem)

    return pl.pallas_call(
        kernel,
        out_shape=jax.ShapeDtypeStruct((N, O), jnp.float32),
        grid=grid,
        in_specs=in_specs,
        out_specs=out_specs,
        scratch_shapes=[pltpu.VMEM((tn, D), jnp.float32),
                        pltpu.VMEM((tn, 3 * D), jnp.float32)],
        compiler_params=pltpu.CompilerParams(
            dimension_semantics=("parallel", "arbitrary"),
            vmem_limit_bytes=int(vmem_limit)),
    )(xr, vr, *weights, bias)


# ---------------------------------------------------------------------------
# Parameters / synthetic featurizer / reference
# ---------------------------------------------------------------------------
def init_params(key, D, H, O):
    keys = iter(jax.random.split(key, 32))

    def w(shape, fan_in=None):
        fi = shape[0] if fan_in is None else fan_in
        return jax.random.normal(next(keys), shape, jnp.float32) / jnp.sqrt(float(fi))

    def b(shape):
        return jax.random.normal(next(keys), shape, jnp.float32) * 0.01

    Dh = D // 2
    p = {}
    # Block 1: GatedEquivariantBlock(D, Dh, intermediate=D, scalar_activation=True)
    p["w1a"] = w((D, D));   p["w2a"] = w((D, Dh))
    p["u1xa"] = w((D, D), 2 * D); p["u1va"] = w((D, D), 2 * D); p["b1a"] = b((1, D))
    p["u2xa"] = w((D, Dh)); p["b2xa"] = b((1, Dh))
    p["u2va"] = w((D, Dh)); p["b2va"] = b((1, Dh))
    # Block 2: GatedEquivariantBlock(Dh, H, intermediate=Dh, scalar_activation=False)
    p["w1b"] = w((Dh, Dh)); p["w2b"] = w((Dh, H))
    p["u1xb"] = w((Dh, Dh), 2 * Dh); p["u1vb"] = w((Dh, Dh), 2 * Dh); p["b1b"] = b((1, Dh))
    p["u2xb"] = w((Dh, H)); p["b2xb"] = b((1, H))
    p["u2vb"] = w((Dh, H)); p["b2vb"] = b((1, H))
    # graph_projection
    p["g1"] = w((H, H)); p["gb1"] = b((1, H))
    p["g2"] = w((H, O)); p["gb2"] = b((1, O))
    return p


def synthetic_representation_model(z_batch, pos, batch, D, key,
                                   out_dtype=jnp.bfloat16):
    # TODO(synk): the external GNN `representation_model` (e.g. TorchMD-ET) has no
    # Pallas equivalent; a deterministic per-atom featurizer stands in for it.
    # It emits bf16 directly so the narrow-dtype cast fuses into the featurizer
    # instead of costing a standalone HBM pass before the kernel.
    del batch
    k1, k2 = jax.random.split(key)
    z_table = jax.random.normal(k1, (16, D), jnp.float32) * 0.2
    wp = jax.random.normal(k2, (3, D), jnp.float32) * 0.2
    emb = z_table[z_batch]                                       # (M, D)
    x_rep = jnp.tanh(pos @ wp + emb).astype(out_dtype)           # (M, D)
    v_rep = (pos[:, :, None] * emb[:, None, :]).astype(out_dtype)  # (M, 3, D)
    return x_rep, v_rep, None


def otf_lobe_reference(x_rep, v_rep, p):
    """Pure-JAX reference mirroring the PyTorch forward (vector_features=True)."""
    x = x_rep.sum(axis=1)                               # (N, D)
    v = v_rep.sum(axis=1)                               # (N, 3, D)

    def block(x, v, w1, w2, u1x, u1v, b1, u2x, b2x, u2v, b2v, scalar_act):
        vec1 = jnp.linalg.norm(jnp.einsum("nic,co->nio", v, w1), axis=1)
        vec2 = jnp.einsum("nic,co->nio", v, w2)
        h = jax.nn.silu(x @ u1x + vec1 @ u1v + b1)
        xo = h @ u2x + b2x
        gate = h @ u2v + b2v
        vo = gate[:, None, :] * vec2
        if scalar_act:
            xo = jax.nn.silu(xo)
        return xo, vo

    x, v = block(x, v, p["w1a"], p["w2a"], p["u1xa"], p["u1va"], p["b1a"],
                 p["u2xa"], p["b2xa"], p["u2va"], p["b2va"], True)
    x, v = block(x, v, p["w1b"], p["w2b"], p["u1xb"], p["u1vb"], p["b1b"],
                 p["u2xb"], p["b2xb"], p["u2vb"], p["b2vb"], False)
    h = jax.nn.silu(x @ p["g1"] + p["gb1"])
    return h @ p["g2"] + p["gb2"]


def run_case(key, n_samples, n_atoms, D, H, O, tn=None, ta=None):
    k_data, k_rep, k_par = jax.random.split(key, 3)
    data = jax.random.normal(k_data, (n_samples, n_atoms, 3), jnp.float32)
    atomic_numbers = (jnp.arange(n_atoms, dtype=jnp.int32) % 8) + 1

    # Glue identical to OTFLobe.forward
    z_batch = jnp.broadcast_to(atomic_numbers, (n_samples, n_atoms)).reshape(-1)
    batch_batch = jnp.broadcast_to(jnp.arange(n_samples)[:, None],
                                   (n_samples, n_atoms)).reshape(-1)
    x_rep, v_rep, _ = synthetic_representation_model(
        z_batch, data.reshape(-1, 3), batch_batch, D, k_rep)
    x_rep = x_rep.reshape(n_samples, n_atoms, D)
    v_rep = v_rep.reshape(n_samples, n_atoms, 3, D)

    params = init_params(k_par, D, H, O)

    fwd = jax.jit(functools.partial(otf_lobe_forward, output_dim=O,
                                    tn=tn, ta=ta))
    out = jax.block_until_ready(fwd(x_rep, v_rep, params))
    assert out.shape == (n_samples, O)

    # f32 reference using the exact bf16-stored weights / representations
    # (biases stay f32).  Remaining delta vs the kernel is bf16 rounding of
    # the intermediate activations before each MXU matmul.
    params_q = {k: (v.astype(jnp.bfloat16).astype(jnp.float32)
                    if k in _WEIGHT_ORDER else v)
                for k, v in params.items()}
    ref = otf_lobe_reference(x_rep.astype(jnp.float32),
                             v_rep.astype(jnp.float32), params_q)
    np.testing.assert_allclose(np.asarray(out), np.asarray(ref),
                               rtol=5e-2, atol=1e-1)


if __name__ == "__main__":
    key = jax.random.PRNGKey(0)
    k1, k2, k3 = jax.random.split(key, 3)
    # small canonical case: single tile, full dims
    run_case(k1, n_samples=2, n_atoms=8, D=32, H=32, O=4)
    # multi-tile grid with batch overhang + ragged atom tail (exercises the
    # pl.when init / masked-accumulate / head-finalize paths)
    run_case(k2, n_samples=20, n_atoms=21, D=32, H=32, O=4, tn=8, ta=8)
    # lane-dense D (% 128 == 0), automatic tile selection, >= 2 parallel
    # batch tiles (v7x TensorCore split)
    run_case(k3, n_samples=16, n_atoms=64, D=128, H=64, O=4)
    print("KERNEL_OK")
</pallas_src>

<mosaic_0001>
module attributes {stable_mosaic.version = 11 : i64} {
  func.func @otf_lobe_kernel(%arg0: i32, %arg1: i32, %arg2: memref<2x8x32xbf16, #tpu.memory_space<vmem>>, %arg3: memref<2x8x96xbf16, #tpu.memory_space<vmem>>, %arg4: memref<32x32xbf16, #tpu.memory_space<vmem>>, %arg5: memref<32x16xbf16, #tpu.memory_space<vmem>>, %arg6: memref<32x32xbf16, #tpu.memory_space<vmem>>, %arg7: memref<32x32xbf16, #tpu.memory_space<vmem>>, %arg8: memref<32x16xbf16, #tpu.memory_space<vmem>>, %arg9: memref<32x16xbf16, #tpu.memory_space<vmem>>, %arg10: memref<16x16xbf16, #tpu.memory_space<vmem>>, %arg11: memref<16x32xbf16, #tpu.memory_space<vmem>>, %arg12: memref<16x16xbf16, #tpu.memory_space<vmem>>, %arg13: memref<16x16xbf16, #tpu.memory_space<vmem>>, %arg14: memref<16x32xbf16, #tpu.memory_space<vmem>>, %arg15: memref<16x32xbf16, #tpu.memory_space<vmem>>, %arg16: memref<32x32xbf16, #tpu.memory_space<vmem>>, %arg17: memref<32x4xbf16, #tpu.memory_space<vmem>>, %arg18: memref<8x128xf32, #tpu.memory_space<vmem>>, %arg19: memref<2x4xf32, #tpu.memory_space<vmem>>, %arg20: memref<2x32xf32, #tpu.memory_space<vmem>>, %arg21: memref<2x96xf32, #tpu.memory_space<vmem>>) attributes {dimension_semantics = [#tpu.dimension_semantics<parallel>, #tpu.dimension_semantics<arbitrary>], iteration_bounds = array<i64: 1, 1>, scalar_prefetch = 0 : i64, scratch_operands = 2 : i64, tpu.core_type = #tpu.core_type<tc>, window_params = [{transform_indices = @transform_0, window_bounds = array<i64: 2, 8, 32>}, {transform_indices = @transform_1, window_bounds = array<i64: 2, 8, 96>}, {pipeline_mode = #tpu.pipeline_mode<synchronous>, transform_indices = @transform_2, window_bounds = array<i64: 32, 32>}, {pipeline_mode = #tpu.pipeline_mode<synchronous>, transform_indices = @transform_3, window_bounds = array<i64: 32, 16>}, {pipeline_mode = #tpu.pipeline_mode<synchronous>, transform_indices = @transform_4, window_bounds = array<i64: 32, 32>}, {pipeline_mode = #tpu.pipeline_mode<synchronous>, transform_indices = @transform_5, window_bounds = array<i64: 32, 32>}, {pipeline_mode = #tpu.pipeline_mode<synchronous>, transform_indices = @transform_6, window_bounds = array<i64: 32, 16>}, {pipeline_mode = #tpu.pipeline_mode<synchronous>, transform_indices = @transform_7, window_bounds = array<i64: 32, 16>}, {pipeline_mode = #tpu.pipeline_mode<synchronous>, transform_indices = @transform_8, window_bounds = array<i64: 16, 16>}, {pipeline_mode = #tpu.pipeline_mode<synchronous>, transform_indices = @transform_9, window_bounds = array<i64: 16, 32>}, {pipeline_mode = #tpu.pipeline_mode<synchronous>, transform_indices = @transform_10, window_bounds = array<i64: 16, 16>}, {pipeline_mode = #tpu.pipeline_mode<synchronous>, transform_indices = @transform_11, window_bounds = array<i64: 16, 16>}, {pipeline_mode = #tpu.pipeline_mode<synchronous>, transform_indices = @transform_12, window_bounds = array<i64: 16, 32>}, {pipeline_mode = #tpu.pipeline_mode<synchronous>, transform_indices = @transform_13, window_bounds = array<i64: 16, 32>}, {pipeline_mode = #tpu.pipeline_mode<synchronous>, transform_indices = @transform_14, window_bounds = array<i64: 32, 32>}, {pipeline_mode = #tpu.pipeline_mode<synchronous>, transform_indices = @transform_15, window_bounds = array<i64: 32, 4>}, {pipeline_mode = #tpu.pipeline_mode<synchronous>, transform_indices = @transform_16, window_bounds = array<i64: 8, 128>}, {transform_indices = @transform_17, window_bounds = array<i64: 2, 4>}]} {
    %c0_i32 = arith.constant 0 : i32
    %0 = arith.cmpi eq, %arg1, %c0_i32 : i32
    %1 = arith.extui %0 : i1 to i32
    %c0_i32_0 = arith.constant 0 : i32
    %2 = arith.cmpi ne, %1, %c0_i32_0 : i32
    scf.if %2 {
      %cst_17 = arith.constant 0.000000e+00 : f32
      %18 = vector.broadcast %cst_17 : f32 to vector<2x32xf32>
      %c0_18 = arith.constant 0 : index
      %c0_19 = arith.constant 0 : index
      %19 = vector.load %arg20[%c0_18, %c0_19] : memref<2x32xf32, #tpu.memory_space<vmem>>, vector<2x32xf32>
      tpu.vector_store %arg20[%c0_18, %c0_19], %18 {strides = array<i32>} : memref<2x32xf32, #tpu.memory_space<vmem>>, vector<2x32xf32>,
      %cst_20 = arith.constant 0.000000e+00 : f32
      %20 = vector.broadcast %cst_20 : f32 to vector<2x96xf32>
      %c0_21 = arith.constant 0 : index
      %c0_22 = arith.constant 0 : index
      %21 = vector.load %arg21[%c0_21, %c0_22] : memref<2x96xf32, #tpu.memory_space<vmem>>, vector<2x96xf32>
      tpu.vector_store %arg21[%c0_21, %c0_22], %20 {strides = array<i32>} : memref<2x96xf32, #tpu.memory_space<vmem>>, vector<2x96xf32>,
    } else {
    }
    %c0 = arith.constant 0 : index
    %c0_1 = arith.constant 0 : index
    %c0_2 = arith.constant 0 : index
    %3 = vector.load %arg2[%c0, %c0_1, %c0_2] : memref<2x8x32xbf16, #tpu.memory_space<vmem>>, vector<2x8x32xbf16>
    %c0_3 = arith.constant 0 : index
    %c0_4 = arith.constant 0 : index
    %c0_5 = arith.constant 0 : index
    %4 = vector.load %arg3[%c0_3, %c0_4, %c0_5] : memref<2x8x96xbf16, #tpu.memory_space<vmem>>, vector<2x8x96xbf16>
    %c0_6 = arith.constant 0 : index
    %c0_7 = arith.constant 0 : index
    %5 = vector.load %arg20[%c0_6, %c0_7] : memref<2x32xf32, #tpu.memory_space<vmem>>, vector<2x32xf32>
    %6 = arith.extf %3 : vector<2x8x32xbf16> to vector<2x8x32xf32>
    %cst = arith.constant dense<0.000000e+00> : vector<2x32xf32>
    %7 = vector.multi_reduction <add>, %6, %cst [1] : vector<2x8x32xf32> to vector<2x32xf32>
    %8 = arith.addf %5, %7 : vector<2x32xf32>
    %c0_8 = arith.constant 0 : index
    %c0_9 = arith.constant 0 : index
    %9 = vector.load %arg20[%c0_8, %c0_9] : memref<2x32xf32, #tpu.memory_space<vmem>>, vector<2x32xf32>
    tpu.vector_store %arg20[%c0_8, %c0_9], %8 {strides = array<i32>} : memref<2x32xf32, #tpu.memory_space<vmem>>, vector<2x32xf32>,
    %c0_10 = arith.constant 0 : index
    %c0_11 = arith.constant 0 : index
    %10 = vector.load %arg21[%c0_10, %c0_11] : memref<2x96xf32, #tpu.memory_space<vmem>>, vector<2x96xf32>
    %11 = arith.extf %4 : vector<2x8x96xbf16> to vector<2x8x96xf32>
    %cst_12 = arith.constant dense<0.000000e+00> : vector<2x96xf32>
    %12 = vector.multi_reduction <add>, %11, %cst_12 [1] : vector<2x8x96xf32> to vector<2x96xf32>
    %13 = arith.addf %10, %12 : vector<2x96xf32>
    %c0_13 = arith.constant 0 : index
    %c0_14 = arith.constant 0 : index
    %14 = vector.load %arg21[%c0_13, %c0_14] : memref<2x96xf32, #tpu.memory_space<vmem>>, vector<2x96xf32>
    tpu.vector_store %arg21[%c0_13, %c0_14], %13 {strides = array<i32>} : memref<2x96xf32, #tpu.memory_space<vmem>>, vector<2x96xf32>,
    %c0_i32_15 = arith.constant 0 : i32
    %15 = arith.cmpi eq, %arg1, %c0_i32_15 : i32
    %16 = arith.extui %15 : i1 to i32
    %c0_i32_16 = arith.constant 0 : i32
    %17 = arith.cmpi ne, %16, %c0_i32_16 : i32
    scf.if %17 {
      %c0_17 = arith.constant 0 : index
      %c0_18 = arith.constant 0 : index
      %18 = vector.load %arg18[%c0_17, %c0_18] : memref<8x128xf32, #tpu.memory_space<vmem>>, vector<8x128xf32>
      %c0_19 = arith.constant 0 : index
      %c0_20 = arith.constant 0 : index
      %19 = vector.load %arg20[%c0_19, %c0_20] : memref<2x32xf32, #tpu.memory_space<vmem>>, vector<2x32xf32>
      %c0_21 = arith.constant 0 : index
      %c0_22 = arith.constant 0 : index
      %20 = vector.load %arg21[%c0_21, %c0_22] : memref<2x96xf32, #tpu.memory_space<vmem>>, vector<2x96xf32>
      %21 = vector.extract_strided_slice %20 {offsets = [0, 0], sizes = [2, 32], strides = [1, 1]} : vector<2x96xf32> to vector<2x32xf32>
      %22 = vector.extract_strided_slice %20 {offsets = [0, 32], sizes = [2, 32], strides = [1, 1]} : vector<2x96xf32> to vector<2x32xf32>
      %23 = vector.extract_strided_slice %20 {offsets = [0, 64], sizes = [2, 32], strides = [1, 1]} : vector<2x96xf32> to vector<2x32xf32>
      %24 = vector.extract_strided_slice %18 {offsets = [0, 0], sizes = [1, 32], strides = [1, 1]} : vector<8x128xf32> to vector<1x32xf32>
      %25 = vector.extract_strided_slice %18 {offsets = [1, 0], sizes = [1, 16], strides = [1, 1]} : vector<8x128xf32> to vector<1x16xf32>
      %26 = vector.extract_strided_slice %18 {offsets = [2, 0], sizes = [1, 16], strides = [1, 1]} : vector<8x128xf32> to vector<1x16xf32>
      %27 = arith.truncf %21 : vector<2x32xf32> to vector<2x32xbf16>
      %c0_23 = arith.constant 0 : index
      %c0_24 = arith.constant 0 : index
      %28 = vector.load %arg4[%c0_23, %c0_24] : memref<32x32xbf16, #tpu.memory_space<vmem>>, vector<32x32xbf16>
      %cst_25 = arith.constant dense<0.000000e+00> : vector<2x32xf32>
      %29 = tpu.matmul %27, %28, %cst_25 {dimension_numbers = #tpu.dot_dimension_numbers<[1], [0], [0], [1], [0, 0, 1, 1], [], []>} : vector<2x32xbf16>, vector<32x32xbf16>, vector<2x32xf32> -> vector<2x32xf32>
      %30 = arith.truncf %22 : vector<2x32xf32> to vector<2x32xbf16>
      %c0_26 = arith.constant 0 : index
      %c0_27 = arith.constant 0 : index
      %31 = vector.load %arg4[%c0_26, %c0_27] : memref<32x32xbf16, #tpu.memory_space<vmem>>, vector<32x32xbf16>
      %cst_28 = arith.constant dense<0.000000e+00> : vector<2x32xf32>
      %32 = tpu.matmul %30, %31, %cst_28 {dimension_numbers = #tpu.dot_dimension_numbers<[1], [0], [0], [1], [0, 0, 1, 1], [], []>} : vector<2x32xbf16>, vector<32x32xbf16>, vector<2x32xf32> -> vector<2x32xf32>
      %33 = arith.truncf %23 : vector<2x32xf32> to vector<2x32xbf16>
      %c0_29 = arith.constant 0 : index
      %c0_30 = arith.constant 0 : index
      %34 = vector.load %arg4[%c0_29, %c0_30] : memref<32x32xbf16, #tpu.memory_space<vmem>>, vector<32x32xbf16>
      %cst_31 = arith.constant dense<0.000000e+00> : vector<2x32xf32>
      %35 = tpu.matmul %33, %34, %cst_31 {dimension_numbers = #tpu.dot_dimension_numbers<[1], [0], [0], [1], [0, 0, 1, 1], [], []>} : vector<2x32xbf16>, vector<32x32xbf16>, vector<2x32xf32> -> vector<2x32xf32>
      %36 = arith.truncf %21 : vector<2x32xf32> to vector<2x32xbf16>
      %c0_32 = arith.constant 0 : index
      %c0_33 = arith.constant 0 : index
      %37 = vector.load %arg5[%c0_32, %c0_33] : memref<32x16xbf16, #tpu.memory_space<vmem>>, vector<32x16xbf16>
      %cst_34 = arith.constant dense<0.000000e+00> : vector<2x16xf32>
      %38 = tpu.matmul %36, %37, %cst_34 {dimension_numbers = #tpu.dot_dimension_numbers<[1], [0], [0], [1], [0, 0, 1, 1], [], []>} : vector<2x32xbf16>, vector<32x16xbf16>, vector<2x16xf32> -> vector<2x16xf32>
      %39 = arith.truncf %22 : vector<2x32xf32> to vector<2x32xbf16>
      %c0_35 = arith.constant 0 : index
      %c0_36 = arith.constant 0 : index
      %40 = vector.load %arg5[%c0_35, %c0_36] : memref<32x16xbf16, #tpu.memory_space<vmem>>, vector<32x16xbf16>
      %cst_37 = arith.constant dense<0.000000e+00> : vector<2x16xf32>
      %41 = tpu.matmul %39, %40, %cst_37 {dimension_numbers = #tpu.dot_dimension_numbers<[1], [0], [0], [1], [0, 0, 1, 1], [], []>} : vector<2x32xbf16>, vector<32x16xbf16>, vector<2x16xf32> -> vector<2x16xf32>
      %42 = arith.truncf %23 : vector<2x32xf32> to vector<2x32xbf16>
      %c0_38 = arith.constant 0 : index
      %c0_39 = arith.constant 0 : index
      %43 = vector.load %arg5[%c0_38, %c0_39] : memref<32x16xbf16, #tpu.memory_space<vmem>>, vector<32x16xbf16>
      %cst_40 = arith.constant dense<0.000000e+00> : vector<2x16xf32>
      %44 = tpu.matmul %42, %43, %cst_40 {dimension_numbers = #tpu.dot_dimension_numbers<[1], [0], [0], [1], [0, 0, 1, 1], [], []>} : vector<2x32xbf16>, vector<32x16xbf16>, vector<2x16xf32> -> vector<2x16xf32>
      %45 = arith.mulf %29, %29 : vector<2x32xf32>
      %46 = arith.mulf %32, %32 : vector<2x32xf32>
      %47 = arith.addf %45, %46 : vector<2x32xf32>
      %48 = arith.mulf %35, %35 : vector<2x32xf32>
      %49 = arith.addf %47, %48 : vector<2x32xf32>
      %50 = math.sqrt %49 : vector<2x32xf32>
      %51 = arith.truncf %19 : vector<2x32xf32> to vector<2x32xbf16>
      %c0_41 = arith.constant 0 : index
      %c0_42 = arith.constant 0 : index
      %52 = vector.load %arg6[%c0_41, %c0_42] : memref<32x32xbf16, #tpu.memory_space<vmem>>, vector<32x32xbf16>
      %cst_43 = arith.constant dense<0.000000e+00> : vector<2x32xf32>
      %53 = tpu.matmul %51, %52, %cst_43 {dimension_numbers = #tpu.dot_dimension_numbers<[1], [0], [0], [1], [0, 0, 1, 1], [], []>} : vector<2x32xbf16>, vector<32x32xbf16>, vector<2x32xf32> -> vector<2x32xf32>
      %54 = arith.truncf %50 : vector<2x32xf32> to vector<2x32xbf16>
      %c0_44 = arith.constant 0 : index
      %c0_45 = arith.constant 0 : index
      %55 = vector.load %arg7[%c0_44, %c0_45] : memref<32x32xbf16, #tpu.memory_space<vmem>>, vector<32x32xbf16>
      %cst_46 = arith.constant dense<0.000000e+00> : vector<2x32xf32>
      %56 = tpu.matmul %54, %55, %cst_46 {dimension_numbers = #tpu.dot_dimension_numbers<[1], [0], [0], [1], [0, 0, 1, 1], [], []>} : vector<2x32xbf16>, vector<32x32xbf16>, vector<2x32xf32> -> vector<2x32xf32>
      %57 = arith.addf %53, %56 : vector<2x32xf32>
      %58 = vector.broadcast %24 : vector<1x32xf32> to vector<2x32xf32>
      %59 = arith.addf %57, %58 : vector<2x32xf32>
      %60 = arith.negf %59 : vector<2x32xf32>
      %61 = math.exp %60 : vector<2x32xf32>
      %cst_47 = arith.constant 1.000000e+00 : f32
      %62 = vector.broadcast %cst_47 : f32 to vector<2x32xf32>
      %63 = arith.addf %62, %61 : vector<2x32xf32>
      %64 = arith.divf %62, %63 : vector<2x32xf32>
      %65 = arith.mulf %59, %64 : vector<2x32xf32>
      %66 = arith.truncf %65 : vector<2x32xf32> to vector<2x32xbf16>
      %c0_48 = arith.constant 0 : index
      %c0_49 = arith.constant 0 : index
      %67 = vector.load %arg8[%c0_48, %c0_49] : memref<32x16xbf16, #tpu.memory_space<vmem>>, vector<32x16xbf16>
      %cst_50 = arith.constant dense<0.000000e+00> : vector<2x16xf32>
      %68 = tpu.matmul %66, %67, %cst_50 {dimension_numbers = #tpu.dot_dimension_numbers<[1], [0], [0], [1], [0, 0, 1, 1], [], []>} : vector<2x32xbf16>, vector<32x16xbf16>, vector<2x16xf32> -> vector<2x16xf32>
      %69 = vector.broadcast %25 : vector<1x16xf32> to vector<2x16xf32>
      %70 = arith.addf %68, %69 : vector<2x16xf32>
      %71 = arith.truncf %65 : vector<2x32xf32> to vector<2x32xbf16>
      %c0_51 = arith.constant 0 : index
      %c0_52 = arith.constant 0 : index
      %72 = vector.load %arg9[%c0_51, %c0_52] : memref<32x16xbf16, #tpu.memory_space<vmem>>, vector<32x16xbf16>
      %cst_53 = arith.constant dense<0.000000e+00> : vector<2x16xf32>
      %73 = tpu.matmul %71, %72, %cst_53 {dimension_numbers = #tpu.dot_dimension_numbers<[1], [0], [0], [1], [0, 0, 1, 1], [], []>} : vector<2x32xbf16>, vector<32x16xbf16>, vector<2x16xf32> -> vector<2x16xf32>
      %74 = vector.broadcast %26 : vector<1x16xf32> to vector<2x16xf32>
      %75 = arith.addf %73, %74 : vector<2x16xf32>
      %76 = arith.mulf %75, %38 : vector<2x16xf32>
      %77 = arith.mulf %75, %41 : vector<2x16xf32>
      %78 = arith.mulf %75, %44 : vector<2x16xf32>
      %79 = arith.negf %70 : vector<2x16xf32>
      %80 = math.exp %79 : vector<2x16xf32>
      %cst_54 = arith.constant 1.000000e+00 : f32
      %81 = vector.broadcast %cst_54 : f32 to vector<2x16xf32>
      %82 = arith.addf %81, %80 : vector<2x16xf32>
      %83 = arith.divf %81, %82 : vector<2x16xf32>
      %84 = arith.mulf %70, %83 : vector<2x16xf32>
      %85 = vector.extract_strided_slice %18 {offsets = [3, 0], sizes = [1, 16], strides = [1, 1]} : vector<8x128xf32> to vector<1x16xf32>
      %86 = vector.extract_strided_slice %18 {offsets = [4, 0], sizes = [1, 32], strides = [1, 1]} : vector<8x128xf32> to vector<1x32xf32>
      %87 = arith.truncf %76 : vector<2x16xf32> to vector<2x16xbf16>
      %c0_55 = arith.constant 0 : index
      %c0_56 = arith.constant 0 : index
      %88 = vector.load %arg10[%c0_55, %c0_56] : memref<16x16xbf16, #tpu.memory_space<vmem>>, vector<16x16xbf16>
      %cst_57 = arith.constant dense<0.000000e+00> : vector<2x16xf32>
      %89 = tpu.matmul %87, %88, %cst_57 {dimension_numbers = #tpu.dot_dimension_numbers<[1], [0], [0], [1], [0, 0, 1, 1], [], []>} : vector<2x16xbf16>, vector<16x16xbf16>, vector<2x16xf32> -> vector<2x16xf32>
      %90 = arith.truncf %77 : vector<2x16xf32> to vector<2x16xbf16>
      %c0_58 = arith.constant 0 : index
      %c0_59 = arith.constant 0 : index
      %91 = vector.load %arg10[%c0_58, %c0_59] : memref<16x16xbf16, #tpu.memory_space<vmem>>, vector<16x16xbf16>
      %cst_60 = arith.constant dense<0.000000e+00> : vector<2x16xf32>
      %92 = tpu.matmul %90, %91, %cst_60 {dimension_numbers = #tpu.dot_dimension_numbers<[1], [0], [0], [1], [0, 0, 1, 1], [], []>} : vector<2x16xbf16>, vector<16x16xbf16>, vector<2x16xf32> -> vector<2x16xf32>
      %93 = arith.truncf %78 : vector<2x16xf32> to vector<2x16xbf16>
      %c0_61 = arith.constant 0 : index
      %c0_62 = arith.constant 0 : index
      %94 = vector.load %arg10[%c0_61, %c0_62] : memref<16x16xbf16, #tpu.memory_space<vmem>>, vector<16x16xbf16>
      %cst_63 = arith.constant dense<0.000000e+00> : vector<2x16xf32>
      %95 = tpu.matmul %93, %94, %cst_63 {dimension_numbers = #tpu.dot_dimension_numbers<[1], [0], [0], [1], [0, 0, 1, 1], [], []>} : vector<2x16xbf16>, vector<16x16xbf16>, vector<2x16xf32> -> vector<2x16xf32>
      %96 = arith.mulf %89, %89 : vector<2x16xf32>
      %97 = arith.mulf %92, %92 : vector<2x16xf32>
      %98 = arith.addf %96, %97 : vector<2x16xf32>
      %99 = arith.mulf %95, %95 : vector<2x16xf32>
      %100 = arith.addf %98, %99 : vector<2x16xf32>
      %101 = math.sqrt %100 : vector<2x16xf32>
      %102 = arith.truncf %84 : vector<2x16xf32> to vector<2x16xbf16>
      %c0_64 = arith.constant 0 : index
      %c0_65 = arith.constant 0 : index
      %103 = vector.load %arg12[%c0_64, %c0_65] : memref<16x16xbf16, #tpu.memory_space<vmem>>, vector<16x16xbf16>
      %cst_66 = arith.constant dense<0.000000e+00> : vector<2x16xf32>
      %104 = tpu.matmul %102, %103, %cst_66 {dimension_numbers = #tpu.dot_dimension_numbers<[1], [0], [0], [1], [0, 0, 1, 1], [], []>} : vector<2x16xbf16>, vector<16x16xbf16>, vector<2x16xf32> -> vector<2x16xf32>
      %105 = arith.truncf %101 : vector<2x16xf32> to vector<2x16xbf16>
      %c0_67 = arith.constant 0 : index
      %c0_68 = arith.constant 0 : index
      %106 = vector.load %arg13[%c0_67, %c0_68] : memref<16x16xbf16, #tpu.memory_space<vmem>>, vector<16x16xbf16>
      %cst_69 = arith.constant dense<0.000000e+00> : vector<2x16xf32>
      %107 = tpu.matmul %105, %106, %cst_69 {dimension_numbers = #tpu.dot_dimension_numbers<[1], [0], [0], [1], [0, 0, 1, 1], [], []>} : vector<2x16xbf16>, vector<16x16xbf16>, vector<2x16xf32> -> vector<2x16xf32>
      %108 = arith.addf %104, %107 : vector<2x16xf32>
      %109 = vector.broadcast %85 : vector<1x16xf32> to vector<2x16xf32>
      %110 = arith.addf %108, %109 : vector<2x16xf32>
      %111 = arith.negf %110 : vector<2x16xf32>
      %112 = math.exp %111 : vector<2x16xf32>
      %cst_70 = arith.constant 1.000000e+00 : f32
      %113 = vector.broadcast %cst_70 : f32 to vector<2x16xf32>
      %114 = arith.addf %113, %112 : vector<2x16xf32>
      %115 = arith.divf %113, %114 : vector<2x16xf32>
      %116 = arith.mulf %110, %115 : vector<2x16xf32>
      %117 = arith.truncf %116 : vector<2x16xf32> to vector<2x16xbf16>
      %c0_71 = arith.constant 0 : index
      %c0_72 = arith.constant 0 : index
      %118 = vector.load %arg14[%c0_71, %c0_72] : memref<16x32xbf16, #tpu.memory_space<vmem>>, vector<16x32xbf16>
      %cst_73 = arith.constant dense<0.000000e+00> : vector<2x32xf32>
      %119 = tpu.matmul %117, %118, %cst_73 {dimension_numbers = #tpu.dot_dimension_numbers<[1], [0], [0], [1], [0, 0, 1, 1], [], []>} : vector<2x16xbf16>, vector<16x32xbf16>, vector<2x32xf32> -> vector<2x32xf32>
      %120 = vector.broadcast %86 : vector<1x32xf32> to vector<2x32xf32>
      %121 = arith.addf %119, %120 : vector<2x32xf32>
      %122 = arith.truncf %121 : vector<2x32xf32> to vector<2x32xbf16>
      %c0_74 = arith.constant 0 : index
      %c0_75 = arith.constant 0 : index
      %123 = vector.load %arg16[%c0_74, %c0_75] : memref<32x32xbf16, #tpu.memory_space<vmem>>, vector<32x32xbf16>
      %cst_76 = arith.constant dense<0.000000e+00> : vector<2x32xf32>
      %124 = tpu.matmul %122, %123, %cst_76 {dimension_numbers = #tpu.dot_dimension_numbers<[1], [0], [0], [1], [0, 0, 1, 1], [], []>} : vector<2x32xbf16>, vector<32x32xbf16>, vector<2x32xf32> -> vector<2x32xf32>
      %125 = vector.extract_strided_slice %18 {offsets = [6, 0], sizes = [1, 32], strides = [1, 1]} : vector<8x128xf32> to vector<1x32xf32>
      %126 = vector.broadcast %125 : vector<1x32xf32> to vector<2x32xf32>
      %127 = arith.addf %124, %126 : vector<2x32xf32>
      %128 = arith.negf %127 : vector<2x32xf32>
      %129 = math.exp %128 : vector<2x32xf32>
      %cst_77 = arith.constant 1.000000e+00 : f32
      %130 = vector.broadcast %cst_77 : f32 to vector<2x32xf32>
      %131 = arith.addf %130, %129 : vector<2x32xf32>
      %132 = arith.divf %130, %131 : vector<2x32xf32>
      %133 = arith.mulf %127, %132 : vector<2x32xf32>
      %134 = arith.truncf %133 : vector<2x32xf32> to vector<2x32xbf16>
      %c0_78 = arith.constant 0 : index
      %c0_79 = arith.constant 0 : index
      %135 = vector.load %arg17[%c0_78, %c0_79] : memref<32x4xbf16, #tpu.memory_space<vmem>>, vector<32x4xbf16>
      %cst_80 = arith.constant dense<0.000000e+00> : vector<2x4xf32>
      %136 = tpu.matmul %134, %135, %cst_80 {dimension_numbers = #tpu.dot_dimension_numbers<[1], [0], [0], [1], [0, 0, 1, 1], [], []>} : vector<2x32xbf16>, vector<32x4xbf16>, vector<2x4xf32> -> vector<2x4xf32>
      %137 = vector.extract_strided_slice %18 {offsets = [7, 0], sizes = [1, 4], strides = [1, 1]} : vector<8x128xf32> to vector<1x4xf32>
      %138 = vector.broadcast %137 : vector<1x4xf32> to vector<2x4xf32>
      %139 = arith.addf %136, %138 : vector<2x4xf32>
      %c0_81 = arith.constant 0 : index
      %c0_82 = arith.constant 0 : index
      %140 = vector.load %arg19[%c0_81, %c0_82] : memref<2x4xf32, #tpu.memory_space<vmem>>, vector<2x4xf32>
      tpu.vector_store %arg19[%c0_81, %c0_82], %139 {strides = array<i32>} : memref<2x4xf32, #tpu.memory_space<vmem>>, vector<2x4xf32>,
    } else {
    }
    return
  }
  func.func @transform_0(%arg0: i32, %arg1: i32) -> (i32, i32, i32) {
    %c0_i32 = arith.constant 0 : i32
    %c0_i32_0 = arith.constant 0 : i32
    return %arg0, %arg1, %c0_i32 : i32, i32, i32
  }
  func.func @transform_1(%arg0: i32, %arg1: i32) -> (i32, i32, i32) {
    %c0_i32 = arith.constant 0 : i32
    %c0_i32_0 = arith.constant 0 : i32
    return %arg0, %arg1, %c0_i32 : i32, i32, i32
  }
  func.func @transform_2(%arg0: i32, %arg1: i32) -> (i32, i32) {
    %c0_i32 = arith.constant 0 : i32
    %c0_i32_0 = arith.constant 0 : i32
    %c0_i32_1 = arith.constant 0 : i32
    return %c0_i32, %c0_i32_0 : i32, i32
  }
  func.func @transform_3(%arg0: i32, %arg1: i32) -> (i32, i32) {
    %c0_i32 = arith.constant 0 : i32
    %c0_i32_0 = arith.constant 0 : i32
    %c0_i32_1 = arith.constant 0 : i32
    return %c0_i32, %c0_i32_0 : i32, i32
  }
  func.func @transform_4(%arg0: i32, %arg1: i32) -> (i32, i32) {
    %c0_i32 = arith.constant 0 : i32
    %c0_i32_0 = arith.constant 0 : i32
    %c0_i32_1 = arith.constant 0 : i32
    return %c0_i32, %c0_i32_0 : i32, i32
  }
  func.func @transform_5(%arg0: i32, %arg1: i32) -> (i32, i32) {
    %c0_i32 = arith.constant 0 : i32
    %c0_i32_0 = arith.constant 0 : i32
    %c0_i32_1 = arith.constant 0 : i32
    return %c0_i32, %c0_i32_0 : i32, i32
  }
  func.func @transform_6(%arg0: i32, %arg1: i32) -> (i32, i32) {
    %c0_i32 = arith.constant 0 : i32
    %c0_i32_0 = arith.constant 0 : i32
    %c0_i32_1 = arith.constant 0 : i32
    return %c0_i32, %c0_i32_0 : i32, i32
  }
  func.func @transform_7(%arg0: i32, %arg1: i32) -> (i32, i32) {
    %c0_i32 = arith.constant 0 : i32
    %c0_i32_0 = arith.constant 0 : i32
    %c0_i32_1 = arith.constant 0 : i32
    return %c0_i32, %c0_i32_0 : i32, i32
  }
  func.func @transform_8(%arg0: i32, %arg1: i32) -> (i32, i32) {
    %c0_i32 = arith.constant 0 : i32
    %c0_i32_0 = arith.constant 0 : i32
    %c0_i32_1 = arith.constant 0 : i32
    return %c0_i32, %c0_i32_0 : i32, i32
  }
  func.func @transform_9(%arg0: i32, %arg1: i32) -> (i32, i32) {
    %c0_i32 = arith.constant 0 : i32
    %c0_i32_0 = arith.constant 0 : i32
    %c0_i32_1 = arith.constant 0 : i32
    return %c0_i32, %c0_i32_0 : i32, i32
  }
  func.func @transform_10(%arg0: i32, %arg1: i32) -> (i32, i32) {
    %c0_i32 = arith.constant 0 : i32
    %c0_i32_0 = arith.constant 0 : i32
    %c0_i32_1 = arith.constant 0 : i32
    return %c0_i32, %c0_i32_0 : i32, i32
  }
  func.func @transform_11(%arg0: i32, %arg1: i32) -> (i32, i32) {
    %c0_i32 = arith.constant 0 : i32
    %c0_i32_0 = arith.constant 0 : i32
    %c0_i32_1 = arith.constant 0 : i32
    return %c0_i32, %c0_i32_0 : i32, i32
  }
  func.func @transform_12(%arg0: i32, %arg1: i32) -> (i32, i32) {
    %c0_i32 = arith.constant 0 : i32
    %c0_i32_0 = arith.constant 0 : i32
    %c0_i32_1 = arith.constant 0 : i32
    return %c0_i32, %c0_i32_0 : i32, i32
  }
  func.func @transform_13(%arg0: i32, %arg1: i32) -> (i32, i32) {
    %c0_i32 = arith.constant 0 : i32
    %c0_i32_0 = arith.constant 0 : i32
    %c0_i32_1 = arith.constant 0 : i32
    return %c0_i32, %c0_i32_0 : i32, i32
  }
  func.func @transform_14(%arg0: i32, %arg1: i32) -> (i32, i32) {
    %c0_i32 = arith.constant 0 : i32
    %c0_i32_0 = arith.constant 0 : i32
    %c0_i32_1 = arith.constant 0 : i32
    return %c0_i32, %c0_i32_0 : i32, i32
  }
  func.func @transform_15(%arg0: i32, %arg1: i32) -> (i32, i32) {
    %c0_i32 = arith.constant 0 : i32
    %c0_i32_0 = arith.constant 0 : i32
    %c0_i32_1 = arith.constant 0 : i32
    return %c0_i32, %c0_i32_0 : i32, i32
  }
  func.func @transform_16(%arg0: i32, %arg1: i32) -> (i32, i32) {
    %c0_i32 = arith.constant 0 : i32
    %c0_i32_0 = arith.constant 0 : i32
    %c0_i32_1 = arith.constant 0 : i32
    return %c0_i32, %c0_i32_0 : i32, i32
  }
  func.func @transform_17(%arg0: i32, %arg1: i32) -> (i32, i32) {
    %c0_i32 = arith.constant 0 : i32
    %c0_i32_0 = arith.constant 0 : i32
    return %arg0, %c0_i32 : i32, i32
  }
}

</mosaic_0001>

<llo_original>
// kernel: otf_lobe_forward.1
$region0: #{otf_lobe_forward.1}
  #allocation0 [shape = 'u32[]', space=smem, size = 0x4, offset = 0x4, fixed_abs, tag = 'smem constant byte address 0x4 - core index']
  #allocation1 [shape = 'u32[144,128]{1,0:T(1,128)}', space=vmem, size = 0x12000, scoped, tag = 'internal scratch']
  #allocation2 [shape = 'f32[2,32]{1,0:T(2,128)}', space=vmem, size = 0x400, scoped, tag = 'scratch operand']
  #allocation3 [shape = 'f32[2,96]{1,0:T(2,128)}', space=vmem, size = 0x400, scoped, tag = 'scratch operand']
  %s0 = inlined_call_operand.vmem [shape: bf16[2,8,32], index: 0, kind: input, shape index: {}]
  %s1 = inlined_call_operand.vmem [shape: bf16[2,8,96], index: 1, kind: input, shape index: {}]
  %s2 = inlined_call_operand.vmem [shape: bf16[32,32], index: 2, kind: input, shape index: {}]
  %s3 = inlined_call_operand.vmem [shape: bf16[32,16], index: 3, kind: input, shape index: {}]
  %s4 = inlined_call_operand.vmem [shape: bf16[32,32], index: 4, kind: input, shape index: {}]
  %s5 = inlined_call_operand.vmem [shape: bf16[32,32], index: 5, kind: input, shape index: {}]
  %s6 = inlined_call_operand.vmem [shape: bf16[32,16], index: 6, kind: input, shape index: {}]
  %s7 = inlined_call_operand.vmem [shape: bf16[32,16], index: 7, kind: input, shape index: {}]
  %s8 = inlined_call_operand.vmem [shape: bf16[16,16], index: 8, kind: input, shape index: {}]
  %s9 = inlined_call_operand.vmem [shape: bf16[16,32], index: 9, kind: input, shape index: {}]
  %s10 = inlined_call_operand.vmem [shape: bf16[16,16], index: 10, kind: input, shape index: {}]
  %s11 = inlined_call_operand.vmem [shape: bf16[16,16], index: 11, kind: input, shape index: {}]
  %s12 = inlined_call_operand.vmem [shape: bf16[16,32], index: 12, kind: input, shape index: {}]
  %s13 = inlined_call_operand.vmem [shape: bf16[16,32], index: 13, kind: input, shape index: {}]
  %s14 = inlined_call_operand.vmem [shape: bf16[32,32], index: 14, kind: input, shape index: {}]
  %s15 = inlined_call_operand.vmem [shape: bf16[32,4], index: 15, kind: input, shape index: {}]
  %s16 = inlined_call_operand.vmem [shape: f32[8,128], index: 16, kind: input, shape index: {}]
  %s17 = inlined_call_operand.hbm [shape: f32[2,4], index: 17, kind: output, shape index: {}]
  %s18 = sld [smem:[#allocation0]]
  $region86: #{otf_lobe_forward.1} parent=0
    _
  %s20 = ssub.s32 1, %s18
  %s21 = scalar_select 0, %s20, %s18
  $region1: #{otf_lobe_forward.1} parent=0
    #allocation4 [shape = 'u8[1024]{0}', space=vmem, size = 0x400, scoped, tag = 'output window, operand 0, single buffered']
    #allocation5 [shape = 's32[1]{0}', space=sflag, size = 0x4, scoped, tag = 'scoped memory for otf_lobe_forward.1']
    %22 = vsyncpa [#allocation5], 0
    // Predicated region
    $region2: #{otf_lobe_forward.1} parent=1 // pred_check
      _
    $region3: #{otf_lobe_forward.1} parent=1 // pred_check_branch
      %24 = sbr.rel (0) target = $region5
    $region4: #{otf_lobe_forward.1} parent=1 // pred_region
      _
    $region5: #{otf_lobe_forward.1} parent=1 // pred_fallthru
      _
    // Predicated region
    $region6: #{otf_lobe_forward.1} parent=1 // pred_check
      _
    $region7: #{otf_lobe_forward.1} parent=1 // pred_check_branch
      %26 = sbr.rel (0) target = $region9
    $region8: #{otf_lobe_forward.1} parent=1 // pred_region
      _
    $region9: #{otf_lobe_forward.1} parent=1 // pred_fallthru
      _
    // Predicated region
    $region10: #{otf_lobe_forward.1} parent=1 // pred_check
      _
    $region11: #{otf_lobe_forward.1} parent=1 // pred_check_branch
      %28 = sbr.rel (0) target = $region13
    $region12: #{otf_lobe_forward.1} parent=1 // pred_region
      _
    $region13: #{otf_lobe_forward.1} parent=1 // pred_fallthru
      _
    // Predicated region
    $region14: #{otf_lobe_forward.1} parent=1 // pred_check
      _
    $region15: #{otf_lobe_forward.1} parent=1 // pred_check_branch
      %30 = sbr.rel (0) target = $region17
    $region16: #{otf_lobe_forward.1} parent=1 // pred_region
      _
    $region17: #{otf_lobe_forward.1} parent=1 // pred_fallthru
      _
    // Predicated region
    $region18: #{otf_lobe_forward.1} parent=1 // pred_check
      _
    $region19: #{otf_lobe_forward.1} parent=1 // pred_check_branch
      %32 = sbr.rel (0) target = $region21
    $region20: #{otf_lobe_forward.1} parent=1 // pred_region
      _
    $region21: #{otf_lobe_forward.1} parent=1 // pred_fallthru
      _
    // Predicated region
    $region22: #{otf_lobe_forward.1} parent=1 // pred_check
      _
    $region23: #{otf_lobe_forward.1} parent=1 // pred_check_branch
      %34 = sbr.rel (0) target = $region25
    $region24: #{otf_lobe_forward.1} parent=1 // pred_region
      _
    $region25: #{otf_lobe_forward.1} parent=1 // pred_fallthru
      _
    // Predicated region
    $region26: #{otf_lobe_forward.1} parent=1 // pred_check
      _
    $region27: #{otf_lobe_forward.1} parent=1 // pred_check_branch
      %36 = sbr.rel (0) target = $region29
    $region28: #{otf_lobe_forward.1} parent=1 // pred_region
      _
    $region29: #{otf_lobe_forward.1} parent=1 // pred_fallthru
      _
    // Predicated region
    $region30: #{otf_lobe_forward.1} parent=1 // pred_check
      _
    $region31: #{otf_lobe_forward.1} parent=1 // pred_check_branch
      %38 = sbr.rel (0) target = $region33
    $region32: #{otf_lobe_forward.1} parent=1 // pred_region
      _
    $region33: #{otf_lobe_forward.1} parent=1 // pred_fallthru
      _
    // Predicated region
    $region34: #{otf_lobe_forward.1} parent=1 // pred_check
      _
    $region35: #{otf_lobe_forward.1} parent=1 // pred_check_branch
      %40 = sbr.rel (0) target = $region37
    $region36: #{otf_lobe_forward.1} parent=1 // pred_region
      _
    $region37: #{otf_lobe_forward.1} parent=1 // pred_fallthru
      _
    // Predicated region
    $region38: #{otf_lobe_forward.1} parent=1 // pred_check
      _
    $region39: #{otf_lobe_forward.1} parent=1 // pred_check_branch
      %42 = sbr.rel (0) target = $region41
    $region40: #{otf_lobe_forward.1} parent=1 // pred_region
      _
    $region41: #{otf_lobe_forward.1} parent=1 // pred_fallthru
      _
    // Predicated region
    $region42: #{otf_lobe_forward.1} parent=1 // pred_check
      _
    $region43: #{otf_lobe_forward.1} parent=1 // pred_check_branch
      %44 = sbr.rel (0) target = $region45
    $region44: #{otf_lobe_forward.1} parent=1 // pred_region
      _
    $region45: #{otf_lobe_forward.1} parent=1 // pred_fallthru
      _
    // Predicated region
    $region46: #{otf_lobe_forward.1} parent=1 // pred_check
      _
    $region47: #{otf_lobe_forward.1} parent=1 // pred_check_branch
      %46 = sbr.rel (0) target = $region49
    $region48: #{otf_lobe_forward.1} parent=1 // pred_region
      _
    $region49: #{otf_lobe_forward.1} parent=1 // pred_fallthru
      _
    // Predicated region
    $region50: #{otf_lobe_forward.1} parent=1 // pred_check
      _
    $region51: #{otf_lobe_forward.1} parent=1 // pred_check_branch
      %48 = sbr.rel (0) target = $region53
    $region52: #{otf_lobe_forward.1} parent=1 // pred_region
      _
    $region53: #{otf_lobe_forward.1} parent=1 // pred_fallthru
      _
    // Predicated region
    $region54: #{otf_lobe_forward.1} parent=1 // pred_check
      _
    $region55: #{otf_lobe_forward.1} parent=1 // pred_check_branch
      %50 = sbr.rel (0) target = $region57
    $region56: #{otf_lobe_forward.1} parent=1 // pred_region
      _
    $region57: #{otf_lobe_forward.1} parent=1 // pred_fallthru
      _
    // Predicated region
    $region58: #{otf_lobe_forward.1} parent=1 // pred_check
      _
    $region59: #{otf_lobe_forward.1} parent=1 // pred_check_branch
      %52 = sbr.rel (0) target = $region61
    $region60: #{otf_lobe_forward.1} parent=1 // pred_region
      _
    $region61: #{otf_lobe_forward.1} parent=1 // pred_fallthru
      _
    // Predicated region
    $region62: #{otf_lobe_forward.1} parent=1 // pred_check
      _
    $region63: #{otf_lobe_forward.1} parent=1 // pred_check_branch
      %54 = sbr.rel (0) target = $region65
    $region64: #{otf_lobe_forward.1} parent=1 // pred_region
      _
    $region65: #{otf_lobe_forward.1} parent=1 // pred_fallthru
      _
    // Predicated region
    $region66: #{otf_lobe_forward.1} parent=1 // pred_check
      _
    $region67: #{otf_lobe_forward.1} parent=1 // pred_check_branch
      %56 = sbr.rel (0) target = $region69
    $region68: #{otf_lobe_forward.1} parent=1 // pred_region
      _
    $region69: #{otf_lobe_forward.1} parent=1 // pred_fallthru
      _
    %p58 = scmp.eq.s32.totalorder 0, 0
    // Predicated region
    $region70: #{otf_lobe_forward.1} parent=1 // pred_check
      %p59 = pneg %p58
    $region71: #{otf_lobe_forward.1} parent=1 // pred_check_branch
      %61 = sbr.rel (%p59) target = $region73
    $region72: #{otf_lobe_forward.1} parent=1 // pred_region
      %vm62 = vcmask 254976
      %63 = vst.msk [vmem:[#allocation2] sm:$0x3] %vm62, 0.0
      %vm64 = vcmask 779264
      %65 = vst.msk [vmem:[#allocation3] sm:$0x3] %vm64, 0.0
    $region73: #{otf_lobe_forward.1} parent=1 // pred_fallthru
      _
    %v66 = vld [vmem:[%s0] sm:$0xf]
    %v67 = vld [vmem:[%s0 + $0x4] sm:$0xf]
    %v68 = vld [vmem:[%s1] sm:$0xf]
    %v69 = vld [vmem:[%s1 + $0x4] sm:$0xf]
    %v70 = vld [vmem:[#allocation2] sm:$0x3]
    %v71 = vunpack.c.l.bf16 %v66
    %v72 = vunpack.c.l.bf16 %v67
    %vm73 = vcmask 261120
    %v74 = vsel %vm73, %v71, 0.0
    %v75 = vrot.slane %v74, 4
    %v76 = vadd.f32 %v74, %v75
    %v77 = vrot.slane %v76, 2
    %v78 = vadd.f32 %v76, %v77
    %v79 = vrot.slane %v78, 1
    %v80 = vadd.f32 %v78, %v79
    %v81 = vsel %vm73, %v72, 0.0
    %v82 = vrot.slane %v81, 4
    %v83 = vadd.f32 %v81, %v82
    %v84 = vrot.slane %v83, 2
    %v85 = vadd.f32 %v83, %v84
    %v86 = vrot.slane %v85, 1
    %v87 = vadd.f32 %v85, %v86
    %vm90 = vcmask 1041409
    %v91 = vsel %vm90, %v87, %v80
    %v93 = vadd.f32 %v70, %v91
    %vm94 = vcmask 254976
    %95 = vst.msk [vmem:[#allocation2] sm:$0x3] %vm94, %v93
    %v96 = vld [vmem:[#allocation3] sm:$0x3]
    %v97 = vunpack.c.l.bf16 %v68
    %v98 = vunpack.c.l.bf16 %v69
    %vm99 = vcmask 785408
    %v100 = vsel %vm99, %v97, 0.0
    %v101 = vrot.slane %v100, 4
    %v102 = vadd.f32 %v100, %v101
    %v103 = vrot.slane %v102, 2
    %v104 = vadd.f32 %v102, %v103
    %v105 = vrot.slane %v104, 1
    %v106 = vadd.f32 %v104, %v105
    %v107 = vsel %vm99, %v98, 0.0
    %v108 = vrot.slane %v107, 4
    %v109 = vadd.f32 %v107, %v108
    %v110 = vrot.slane %v109, 2
    %v111 = vadd.f32 %v109, %v110
    %v112 = vrot.slane %v111, 1
    %v113 = vadd.f32 %v111, %v112
    %v116 = vsel %vm90, %v113, %v106
    %v118 = vadd.f32 %v96, %v116
    %vm119 = vcmask 779264
    %120 = vst.msk [vmem:[#allocation3] sm:$0x3] %vm119, %v118
    // Predicated region
    $region74: #{otf_lobe_forward.1} parent=1 // pred_check
      %p121 = pneg %p58
    $region75: #{otf_lobe_forward.1} parent=1 // pred_check_branch
      %123 = sbr.rel (%p121) target = $region77
    $region76: #{otf_lobe_forward.1} parent=1 // pred_region
      %v124 = vld [vmem:[%s16] sm:$0xff]
      %v125 = vld [vmem:[#allocation2] sm:$0x3]
      %v126 = vld [vmem:[#allocation3] sm:$0x3]
      %v127 = vpack.c.bf16 %v126, %v126
      %v128 = vld [vmem:[%s2] sm:$0xf]
      %v129 = vld [vmem:[%s2 + $0x4] sm:$0xf]
      %v130 = vld [vmem:[%s2 + $0x8] sm:$0xf]
      %v131 = vld [vmem:[%s2 + $0xc] sm:$0xf]
      %v136 = vunpack.c.l.b16 %v128
      %v137 = vunpack.c.l.b16 %v129
      %v138 = vunpack.c.l.b16 %v130
      %v139 = vunpack.c.l.b16 %v131
      %v140 = vpack.c.b16 %v137, %v136
      %v141 = vpack.c.b16 %v139, %v138
      %v145 = vsel %vm73, %v127, 0
      %147 = vmatprep.subr.bf16.mxu0 0
      %148 = vmatpush1.bf16.msra.mxu0 %v140
      %149 = vmatprep.subr.bf16.mxu0 0
      %150 = vmatpush1.bf16.msra.mxu0 %v141
      %151 = vmatprep.subr.bf16.mxu0 0
      %152 = vmatpush1.bf16.msra.mxu0 0
      %153 = vmatprep.subr.bf16.mxu0 0
      %154 = vmatpush1.bf16.msra.mxu0 0
      %155 = vmatprep.subr.bf16.mxu0 0
      %156 = vmatpush1.bf16.msra.mxu0 0
      %157 = vmatprep.subr.bf16.mxu0 0
      %158 = vmatpush1.bf16.msra.mxu0 0
      %159 = vmatprep.subr.bf16.mxu0 0
      %160 = vmatpush1.bf16.msra.mxu0 0
      %161 = vmatprep.subr.bf16.mxu0 0
      %162 = vmatpush1.bf16.msra.mxu0 0
      %163 = vmatprep.subr.bf16.mxu0 0
      %164 = vmatpush1.bf16.msra.mxu0 0
      %165 = vmatprep.subr.bf16.mxu0 0
      %166 = vmatpush1.bf16.msra.mxu0 0
      %167 = vmatprep.subr.bf16.mxu0 0
      %168 = vmatpush1.bf16.msra.mxu0 0
      %169 = vmatprep.subr.bf16.mxu0 0
      %170 = vmatpush1.bf16.msra.mxu0 0
      %171 = vmatprep.subr.bf16.mxu0 0
      %172 = vmatpush1.bf16.msra.mxu0 0
      %173 = vmatprep.subr.bf16.mxu0 0
      %174 = vmatpush1.bf16.msra.mxu0 0
      %175 = vmatprep.subr.bf16.mxu0 0
      %176 = vmatpush1.bf16.msra.mxu0 0
      %177 = vmatprep.subr.bf16.mxu0 0
      %178 = vmatpush1.bf16.msra.mxu0 0
      %179 = vmatprep.mubr.bf16.mxu0 0
      %180 = vmatmul.mubr.bf16.gmra.mrb[0].mxu0 %v145
      %v181 = vpop.f32.mrb[0].mxu0
      %v182 = vadd.f32 0.0, %v181
      %v183 = vpop.f32.mrb[0].mxu0
      %v184 = vpop.f32.mrb[0].mxu0
      %v185 = vpop.f32.mrb[0].mxu0
      %186 = vdwg.mxu0
      %188 = vrot.lane.b32.xlu0 %v127, 96
      %v189 = vpop.permute.xlu0 %188
      %v191 = vsel %vm73, %v189, 0
      %193 = vmatprep.subr.bf16.mxu0 0
      %194 = vmatpush1.bf16.msra.mxu0 %v140
      %195 = vmatprep.subr.bf16.mxu0 0
      %196 = vmatpush1.bf16.msra.mxu0 %v141
      %197 = vmatprep.subr.bf16.mxu0 0
      %198 = vmatpush1.bf16.msra.mxu0 0
      %199 = vmatprep.subr.bf16.mxu0 0
      %200 = vmatpush1.bf16.msra.mxu0 0
      %201 = vmatprep.subr.bf16.mxu0 0
      %202 = vmatpush1.bf16.msra.mxu0 0
      %203 = vmatprep.subr.bf16.mxu0 0
      %204 = vmatpush1.bf16.msra.mxu0 0
      %205 = vmatprep.subr.bf16.mxu0 0
      %206 = vmatpush1.bf16.msra.mxu0 0
      %207 = vmatprep.subr.bf16.mxu0 0
      %208 = vmatpush1.bf16.msra.mxu0 0
      %209 = vmatprep.subr.bf16.mxu0 0
      %210 = vmatpush1.bf16.msra.mxu0 0
      %211 = vmatprep.subr.bf16.mxu0 0
      %212 = vmatpush1.bf16.msra.mxu0 0
      %213 = vmatprep.subr.bf16.mxu0 0
      %214 = vmatpush1.bf16.msra.mxu0 0
      %215 = vmatprep.subr.bf16.mxu0 0
      %216 = vmatpush1.bf16.msra.mxu0 0
      %217 = vmatprep.subr.bf16.mxu0 0
      %218 = vmatpush1.bf16.msra.mxu0 0
      %219 = vmatprep.subr.bf16.mxu0 0
      %220 = vmatpush1.bf16.msra.mxu0 0
      %221 = vmatprep.subr.bf16.mxu0 0
      %222 = vmatpush1.bf16.msra.mxu0 0
      %223 = vmatprep.subr.bf16.mxu0 0
      %224 = vmatpush1.bf16.msra.mxu0 0
      %225 = vmatprep.mubr.bf16.mxu0 0
      %226 = vmatmul.mubr.bf16.gmra.mrb[0].mxu0 %v191
      %v227 = vpop.f32.mrb[0].mxu0
      %v228 = vadd.f32 0.0, %v227
      %v229 = vpop.f32.mrb[0].mxu0
      %v230 = vpop.f32.mrb[0].mxu0
      %v231 = vpop.f32.mrb[0].mxu0
      %232 = vdwg.mxu0
      %233 = vrot.lane.b32.xlu0 %v127, 64
      %v234 = vpop.permute.xlu0 %233
      %v236 = vsel %vm73, %v234, 0
      %238 = vmatprep.subr.bf16.mxu0 0
      %239 = vmatpush1.bf16.msra.mxu0 %v140
      %240 = vmatprep.subr.bf16.mxu0 0
      %241 = vmatpush1.bf16.msra.mxu0 %v141
      %242 = vmatprep.subr.bf16.mxu0 0
      %243 = vmatpush1.bf16.msra.mxu0 0
      %244 = vmatprep.subr.bf16.mxu0 0
      %245 = vmatpush1.bf16.msra.mxu0 0
      %246 = vmatprep.subr.bf16.mxu0 0
      %247 = vmatpush1.bf16.msra.mxu0 0
      %248 = vmatprep.subr.bf16.mxu0 0
      %249 = vmatpush1.bf16.msra.mxu0 0
      %250 = vmatprep.subr.bf16.mxu0 0
      %251 = vmatpush1.bf16.msra.mxu0 0
      %252 = vmatprep.subr.bf16.mxu0 0
      %253 = vmatpush1.bf16.msra.mxu0 0
      %254 = vmatprep.subr.bf16.mxu0 0
      %255 = vmatpush1.bf16.msra.mxu0 0
      %256 = vmatprep.subr.bf16.mxu0 0
      %257 = vmatpush1.bf16.msra.mxu0 0
      %258 = vmatprep.subr.bf16.mxu0 0
      %259 = vmatpush1.bf16.msra.mxu0 0
      %260 = vmatprep.subr.bf16.mxu0 0
      %261 = vmatpush1.bf16.msra.mxu0 0
      %262 = vmatprep.subr.bf16.mxu0 0
      %263 = vmatpush1.bf16.msra.mxu0 0
      %264 = vmatprep.subr.bf16.mxu0 0
      %265 = vmatpush1.bf16.msra.mxu0 0
      %266 = vmatprep.subr.bf16.mxu0 0
      %267 = vmatpush1.bf16.msra.mxu0 0
      %268 = vmatprep.subr.bf16.mxu0 0
      %269 = vmatpush1.bf16.msra.mxu0 0
      %270 = vmatprep.mubr.bf16.mxu0 0
      %271 = vmatmul.mubr.bf16.gmra.mrb[0].mxu0 %v236
      %v272 = vpop.f32.mrb[0].mxu0
      %v273 = vadd.f32 0.0, %v272
      %v274 = vpop.f32.mrb[0].mxu0
      %v275 = vpop.f32.mrb[0].mxu0
      %v276 = vpop.f32.mrb[0].mxu0
      %277 = vdwg.mxu0
      %v278 = vld [vmem:[%s3] sm:$0xf]
      %v279 = vld [vmem:[%s3 + $0x4] sm:$0xf]
      %v280 = vld [vmem:[%s3 + $0x8] sm:$0xf]
      %v281 = vld [vmem:[%s3 + $0xc] sm:$0xf]
      %v286 = vunpack.c.l.b16 %v278
      %v287 = vunpack.c.l.b16 %v279
      %v288 = vunpack.c.l.b16 %v280
      %v289 = vunpack.c.l.b16 %v281
      %v290 = vpack.c.b16 %v287, %v286
      %v291 = vpack.c.b16 %v289, %v288
      %294 = vmatprep.subr.bf16.mxu0 0
      %295 = vmatpush1.bf16.msra.mxu0 %v290
      %296 = vmatprep.subr.bf16.mxu0 0
      %297 = vmatpush1.bf16.msra.mxu0 %v291
      %298 = vmatprep.subr.bf16.mxu0 0
      %299 = vmatpush1.bf16.msra.mxu0 0
      %300 = vmatprep.subr.bf16.mxu0 0
      %301 = vmatpush1.bf16.msra.mxu0 0
      %302 = vmatprep.subr.bf16.mxu0 0
      %303 = vmatpush1.bf16.msra.mxu0 0
      %304 = vmatprep.subr.bf16.mxu0 0
      %305 = vmatpush1.bf16.msra.mxu0 0
      %306 = vmatprep.subr.bf16.mxu0 0
      %307 = vmatpush1.bf16.msra.mxu0 0
      %308 = vmatprep.subr.bf16.mxu0 0
      %309 = vmatpush1.bf16.msra.mxu0 0
      %310 = vmatprep.subr.bf16.mxu0 0
      %311 = vmatpush1.bf16.msra.mxu0 0
      %312 = vmatprep.subr.bf16.mxu0 0
      %313 = vmatpush1.bf16.msra.mxu0 0
      %314 = vmatprep.subr.bf16.mxu0 0
      %315 = vmatpush1.bf16.msra.mxu0 0
      %316 = vmatprep.subr.bf16.mxu0 0
      %317 = vmatpush1.bf16.msra.mxu0 0
      %318 = vmatprep.subr.bf16.mxu0 0
      %319 = vmatpush1.bf16.msra.mxu0 0
      %320 = vmatprep.subr.bf16.mxu0 0
      %321 = vmatpush1.bf16.msra.mxu0 0
      %322 = vmatprep.subr.bf16.mxu0 0
      %323 = vmatpush1.bf16.msra.mxu0 0
      %324 = vmatprep.subr.bf16.mxu0 0
      %325 = vmatpush1.bf16.msra.mxu0 0
      %326 = vmatprep.mubr.bf16.mxu0 0
      %327 = vmatmul.mubr.bf16.gmra.mrb[0].mxu0 %v145
      %v328 = vpop.f32.mrb[0].mxu0
      %v329 = vadd.f32 0.0, %v328
      %v330 = vpop.f32.mrb[0].mxu0
      %v331 = vpop.f32.mrb[0].mxu0
      %v332 = vpop.f32.mrb[0].mxu0
      %333 = vdwg.mxu0
      %334 = vmatprep.subr.bf16.mxu0 0
      %335 = vmatpush1.bf16.msra.mxu0 %v290
      %336 = vmatprep.subr.bf16.mxu0 0
      %337 = vmatpush1.bf16.msra.mxu0 %v291
      %338 = vmatprep.subr.bf16.mxu0 0
      %339 = vmatpush1.bf16.msra.mxu0 0
      %340 = vmatprep.subr.bf16.mxu0 0
      %341 = vmatpush1.bf16.msra.mxu0 0
      %342 = vmatprep.subr.bf16.mxu0 0
      %343 = vmatpush1.bf16.msra.mxu0 0
      %344 = vmatprep.subr.bf16.mxu0 0
      %345 = vmatpush1.bf16.msra.mxu0 0
      %346 = vmatprep.subr.bf16.mxu0 0
      %347 = vmatpush1.bf16.msra.mxu0 0
      %348 = vmatprep.subr.bf16.mxu0 0
      %349 = vmatpush1.bf16.msra.mxu0 0
      %350 = vmatprep.subr.bf16.mxu0 0
      %351 = vmatpush1.bf16.msra.mxu0 0
      %352 = vmatprep.subr.bf16.mxu0 0
      %353 = vmatpush1.bf16.msra.mxu0 0
      %354 = vmatprep.subr.bf16.mxu0 0
      %355 = vmatpush1.bf16.msra.mxu0 0
      %356 = vmatprep.subr.bf16.mxu0 0
      %357 = vmatpush1.bf16.msra.mxu0 0
      %358 = vmatprep.subr.bf16.mxu0 0
      %359 = vmatpush1.bf16.msra.mxu0 0
      %360 = vmatprep.subr.bf16.mxu0 0
      %361 = vmatpush1.bf16.msra.mxu0 0
      %362 = vmatprep.subr.bf16.mxu0 0
      %363 = vmatpush1.bf16.msra.mxu0 0
      %364 = vmatprep.subr.bf16.mxu0 0
      %365 = vmatpush1.bf16.msra.mxu0 0
      %366 = vmatprep.mubr.bf16.mxu0 0
      %367 = vmatmul.mubr.bf16.gmra.mrb[0].mxu0 %v191
      %v368 = vpop.f32.mrb[0].mxu0
      %v369 = vadd.f32 0.0, %v368
      %v370 = vpop.f32.mrb[0].mxu0
      %v371 = vpop.f32.mrb[0].mxu0
      %v372 = vpop.f32.mrb[0].mxu0
      %373 = vdwg.mxu0
      %374 = vmatprep.subr.bf16.mxu0 0
      %375 = vmatpush1.bf16.msra.mxu0 %v290
      %376 = vmatprep.subr.bf16.mxu0 0
      %377 = vmatpush1.bf16.msra.mxu0 %v291
      %378 = vmatprep.subr.bf16.mxu0 0
      %379 = vmatpush1.bf16.msra.mxu0 0
      %380 = vmatprep.subr.bf16.mxu0 0
      %381 = vmatpush1.bf16.msra.mxu0 0
      %382 = vmatprep.subr.bf16.mxu0 0
      %383 = vmatpush1.bf16.msra.mxu0 0
      %384 = vmatprep.subr.bf16.mxu0 0
      %385 = vmatpush1.bf16.msra.mxu0 0
      %386 = vmatprep.subr.bf16.mxu0 0
      %387 = vmatpush1.bf16.msra.mxu0 0
      %388 = vmatprep.subr.bf16.mxu0 0
      %389 = vmatpush1.bf16.msra.mxu0 0
      %390 = vmatprep.subr.bf16.mxu0 0
      %391 = vmatpush1.bf16.msra.mxu0 0
      %392 = vmatprep.subr.bf16.mxu0 0
      %393 = vmatpush1.bf16.msra.mxu0 0
      %394 = vmatprep.subr.bf16.mxu0 0
      %395 = vmatpush1.bf16.msra.mxu0 0
      %396 = vmatprep.subr.bf16.mxu0 0
      %397 = vmatpush1.bf16.msra.mxu0 0
      %398 = vmatprep.subr.bf16.mxu0 0
      %399 = vmatpush1.bf16.msra.mxu0 0
      %400 = vmatprep.subr.bf16.mxu0 0
      %401 = vmatpush1.bf16.msra.mxu0 0
      %402 = vmatprep.subr.bf16.mxu0 0
      %403 = vmatpush1.bf16.msra.mxu0 0
      %404 = vmatprep.subr.bf16.mxu0 0
      %405 = vmatpush1.bf16.msra.mxu0 0
      %406 = vmatprep.mubr.bf16.mxu0 0
      %407 = vmatmul.mubr.bf16.gmra.mrb[0].mxu0 %v236
      %v408 = vpop.f32.mrb[0].mxu0
      %v409 = vadd.f32 0.0, %v408
      %v410 = vpop.f32.mrb[0].mxu0
      %v411 = vpop.f32.mrb[0].mxu0
      %v412 = vpop.f32.mrb[0].mxu0
      %413 = vdwg.mxu0
      %v414 = vmul.f32 %v182, %v182
      %v415 = vmul.f32 %v228, %v228
      %v416 = vadd.f32 %v414, %v415
      %v417 = vmul.f32 %v273, %v273
      %v418 = vadd.f32 %v416, %v417
      %v419 = vrsqrt.pop %v418
      %v420 = vmul.f32 %v418, %v419
      %vm421 = vcmp.eq.f32.partialorder %v418, inf
      %v422 = vsel %vm421, %v418, %v420
      %vm423 = vcmp.eq.f32.partialorder %v418, 0.0
      %v424 = vand.u32 %v418, 2147483648
      %v425 = vsel %vm423, %v424, %v422
      %v426 = vpack.c.bf16 %v125, %v125
      %v427 = vld [vmem:[%s4] sm:$0xf]
      %v428 = vld [vmem:[%s4 + $0x4] sm:$0xf]
      %v429 = vld [vmem:[%s4 + $0x8] sm:$0xf]
      %v430 = vld [vmem:[%s4 + $0xc] sm:$0xf]
      %v431 = vpack.c.bf16 %v425, %v425
      %v432 = vld [vmem:[%s5] sm:$0xf]
      %v433 = vld [vmem:[%s5 + $0x4] sm:$0xf]
      %v434 = vld [vmem:[%s5 + $0x8] sm:$0xf]
      %v435 = vld [vmem:[%s5 + $0xc] sm:$0xf]
      %v440 = vunpack.c.l.b16 %v432
      %v441 = vunpack.c.l.b16 %v433
      %v442 = vunpack.c.l.b16 %v434
      %v443 = vunpack.c.l.b16 %v435
      %v444 = vpack.c.b16 %v441, %v440
      %v445 = vpack.c.b16 %v443, %v442
      %v449 = vsel %vm73, %v431, 0
      %451 = vmatprep.subr.bf16.mxu0 0
      %452 = vmatpush1.bf16.msra.mxu0 %v444
      %453 = vmatprep.subr.bf16.mxu0 0
      %454 = vmatpush1.bf16.msra.mxu0 %v445
      %455 = vmatprep.subr.bf16.mxu0 0
      %456 = vmatpush1.bf16.msra.mxu0 0
      %457 = vmatprep.subr.bf16.mxu0 0
      %458 = vmatpush1.bf16.msra.mxu0 0
      %459 = vmatprep.subr.bf16.mxu0 0
      %460 = vmatpush1.bf16.msra.mxu0 0
      %461 = vmatprep.subr.bf16.mxu0 0
      %462 = vmatpush1.bf16.msra.mxu0 0
      %463 = vmatprep.subr.bf16.mxu0 0
      %464 = vmatpush1.bf16.msra.mxu0 0
      %465 = vmatprep.subr.bf16.mxu0 0
      %466 = vmatpush1.bf16.msra.mxu0 0
      %467 = vmatprep.subr.bf16.mxu0 0
      %468 = vmatpush1.bf16.msra.mxu0 0
      %469 = vmatprep.subr.bf16.mxu0 0
      %470 = vmatpush1.bf16.msra.mxu0 0
      %471 = vmatprep.subr.bf16.mxu0 0
      %472 = vmatpush1.bf16.msra.mxu0 0
      %473 = vmatprep.subr.bf16.mxu0 0
      %474 = vmatpush1.bf16.msra.mxu0 0
      %475 = vmatprep.subr.bf16.mxu0 0
      %476 = vmatpush1.bf16.msra.mxu0 0
      %477 = vmatprep.subr.bf16.mxu0 0
      %478 = vmatpush1.bf16.msra.mxu0 0
      %479 = vmatprep.subr.bf16.mxu0 0
      %480 = vmatpush1.bf16.msra.mxu0 0
      %481 = vmatprep.subr.bf16.mxu0 0
      %482 = vmatpush1.bf16.msra.mxu0 0
      %483 = vmatprep.mubr.bf16.mxu0 0
      %484 = vmatmul.mubr.bf16.gmra.mrb[0].mxu0 %v449
      %v485 = vpop.f32.mrb[0].mxu0
      %v486 = vadd.f32 0.0, %v485
      %v487 = vpop.f32.mrb[0].mxu0
      %v488 = vpop.f32.mrb[0].mxu0
      %v489 = vpop.f32.mrb[0].mxu0
      %490 = vdwg.mxu0
      %v495 = vunpack.c.l.b16 %v427
      %v496 = vunpack.c.l.b16 %v428
      %v497 = vunpack.c.l.b16 %v429
      %v498 = vunpack.c.l.b16 %v430
      %v499 = vpack.c.b16 %v496, %v495
      %v500 = vpack.c.b16 %v498, %v497
      %v504 = vsel %vm73, %v426, 0
      %506 = vmatprep.subr.bf16.mxu0 0
      %507 = vmatpush1.bf16.msra.mxu0 %v499
      %508 = vmatprep.subr.bf16.mxu0 0
      %509 = vmatpush1.bf16.msra.mxu0 %v500
      %510 = vmatprep.subr.bf16.mxu0 0
      %511 = vmatpush1.bf16.msra.mxu0 0
      %512 = vmatprep.subr.bf16.mxu0 0
      %513 = vmatpush1.bf16.msra.mxu0 0
      %514 = vmatprep.subr.bf16.mxu0 0
      %515 = vmatpush1.bf16.msra.mxu0 0
      %516 = vmatprep.subr.bf16.mxu0 0
      %517 = vmatpush1.bf16.msra.mxu0 0
      %518 = vmatprep.subr.bf16.mxu0 0
      %519 = vmatpush1.bf16.msra.mxu0 0
      %520 = vmatprep.subr.bf16.mxu0 0
      %521 = vmatpush1.bf16.msra.mxu0 0
      %522 = vmatprep.subr.bf16.mxu0 0
      %523 = vmatpush1.bf16.msra.mxu0 0
      %524 = vmatprep.subr.bf16.mxu0 0
      %525 = vmatpush1.bf16.msra.mxu0 0
      %526 = vmatprep.subr.bf16.mxu0 0
      %527 = vmatpush1.bf16.msra.mxu0 0
      %528 = vmatprep.subr.bf16.mxu0 0
      %529 = vmatpush1.bf16.msra.mxu0 0
      %530 = vmatprep.subr.bf16.mxu0 0
      %531 = vmatpush1.bf16.msra.mxu0 0
      %532 = vmatprep.subr.bf16.mxu0 0
      %533 = vmatpush1.bf16.msra.mxu0 0
      %534 = vmatprep.subr.bf16.mxu0 0
      %535 = vmatpush1.bf16.msra.mxu0 0
      %536 = vmatprep.subr.bf16.mxu0 0
      %537 = vmatpush1.bf16.msra.mxu0 0
      %538 = vmatprep.mubr.bf16.mxu0 0
      %539 = vmatmul.mubr.bf16.gmra.mrb[0].mxu0 %v504
      %v540 = vpop.f32.mrb[0].mxu0
      %v541 = vadd.f32 %v486, %v540
      %v542 = vpop.f32.mrb[0].mxu0
      %v543 = vpop.f32.mrb[0].mxu0
      %v544 = vpop.f32.mrb[0].mxu0
      %545 = vdwg.mxu0
      %v546 = vlaneseq
      %v547 = vshrl.u32 %v546, 7
      %v548 = vsub.s32 0, %v547
      %v549 = vrot.slane %v124, %v548
      %v550 = vadd.f32 %v541, %v549
      %v551 = vxor.u32 %v550, 2147483648
      %v552 = vmul.f32 %v551, 1.442695
      %v553 = vpow.pop %v552
      %v554 = vadd.f32 %v553, 1.0
      %v555 = vrcp.pop %v554
      %v556 = vmul.f32 1.0, %v555
      %v557 = vmul.f32 %v550, %v556
      %v558 = vpack.c.bf16 %v557, %v557
      %v559 = vld [vmem:[%s6] sm:$0xf]
      %v560 = vld [vmem:[%s6 + $0x4] sm:$0xf]
      %v561 = vld [vmem:[%s6 + $0x8] sm:$0xf]
      %v562 = vld [vmem:[%s6 + $0xc] sm:$0xf]
      %v563 = vlaneseq
      %v564 = vshrl.u32 %v563, 7
      %v565 = vsub.s32 1, %v564
      %v566 = vrot.slane %v124, %v565
      %v571 = vunpack.c.l.b16 %v559
      %v572 = vunpack.c.l.b16 %v560
      %v573 = vunpack.c.l.b16 %v561
      %v574 = vunpack.c.l.b16 %v562
      %v575 = vpack.c.b16 %v572, %v571
      %v576 = vpack.c.b16 %v574, %v573
      %v580 = vsel %vm73, %v558, 0
      %582 = vmatprep.subr.bf16.mxu0 0
      %583 = vmatpush1.bf16.msra.mxu0 %v575
      %584 = vmatprep.subr.bf16.mxu0 0
      %585 = vmatpush1.bf16.msra.mxu0 %v576
      %586 = vmatprep.subr.bf16.mxu0 0
      %587 = vmatpush1.bf16.msra.mxu0 0
      %588 = vmatprep.subr.bf16.mxu0 0
      %589 = vmatpush1.bf16.msra.mxu0 0
      %590 = vmatprep.subr.bf16.mxu0 0
      %591 = vmatpush1.bf16.msra.mxu0 0
      %592 = vmatprep.subr.bf16.mxu0 0
      %593 = vmatpush1.bf16.msra.mxu0 0
      %594 = vmatprep.subr.bf16.mxu0 0
      %595 = vmatpush1.bf16.msra.mxu0 0
      %596 = vmatprep.subr.bf16.mxu0 0
      %597 = vmatpush1.bf16.msra.mxu0 0
      %598 = vmatprep.subr.bf16.mxu0 0
      %599 = vmatpush1.bf16.msra.mxu0 0
      %600 = vmatprep.subr.bf16.mxu0 0
      %601 = vmatpush1.bf16.msra.mxu0 0
      %602 = vmatprep.subr.bf16.mxu0 0
      %603 = vmatpush1.bf16.msra.mxu0 0
      %604 = vmatprep.subr.bf16.mxu0 0
      %605 = vmatpush1.bf16.msra.mxu0 0
      %606 = vmatprep.subr.bf16.mxu0 0
      %607 = vmatpush1.bf16.msra.mxu0 0
      %608 = vmatprep.subr.bf16.mxu0 0
      %609 = vmatpush1.bf16.msra.mxu0 0
      %610 = vmatprep.subr.bf16.mxu0 0
      %611 = vmatpush1.bf16.msra.mxu0 0
      %612 = vmatprep.subr.bf16.mxu0 0
      %613 = vmatpush1.bf16.msra.mxu0 0
      %614 = vmatprep.mubr.bf16.mxu0 0
      %615 = vmatmul.mubr.bf16.gmra.mrb[0].mxu0 %v580
      %v616 = vpop.f32.mrb[0].mxu0
      %v617 = vadd.f32 %v566, %v616
      %v618 = vpop.f32.mrb[0].mxu0
      %v619 = vpop.f32.mrb[0].mxu0
      %v620 = vpop.f32.mrb[0].mxu0
      %621 = vdwg.mxu0
      %v622 = vld [vmem:[%s7] sm:$0xf]
      %v623 = vld [vmem:[%s7 + $0x4] sm:$0xf]
      %v624 = vld [vmem:[%s7 + $0x8] sm:$0xf]
      %v625 = vld [vmem:[%s7 + $0xc] sm:$0xf]
      %v626 = vlaneseq
      %v627 = vshrl.u32 %v626, 7
      %v628 = vsub.s32 2, %v627
      %v629 = vrot.slane %v124, %v628
      %v634 = vunpack.c.l.b16 %v622
      %v635 = vunpack.c.l.b16 %v623
      %v636 = vunpack.c.l.b16 %v624
      %v637 = vunpack.c.l.b16 %v625
      %v638 = vpack.c.b16 %v635, %v634
      %v639 = vpack.c.b16 %v637, %v636
      %642 = vmatprep.subr.bf16.mxu0 0
      %643 = vmatpush1.bf16.msra.mxu0 %v638
      %644 = vmatprep.subr.bf16.mxu0 0
      %645 = vmatpush1.bf16.msra.mxu0 %v639
      %646 = vmatprep.subr.bf16.mxu0 0
      %647 = vmatpush1.bf16.msra.mxu0 0
      %648 = vmatprep.subr.bf16.mxu0 0
      %649 = vmatpush1.bf16.msra.mxu0 0
      %650 = vmatprep.subr.bf16.mxu0 0
      %651 = vmatpush1.bf16.msra.mxu0 0
      %652 = vmatprep.subr.bf16.mxu0 0
      %653 = vmatpush1.bf16.msra.mxu0 0
      %654 = vmatprep.subr.bf16.mxu0 0
      %655 = vmatpush1.bf16.msra.mxu0 0
      %656 = vmatprep.subr.bf16.mxu0 0
      %657 = vmatpush1.bf16.msra.mxu0 0
      %658 = vmatprep.subr.bf16.mxu0 0
      %659 = vmatpush1.bf16.msra.mxu0 0
      %660 = vmatprep.subr.bf16.mxu0 0
      %661 = vmatpush1.bf16.msra.mxu0 0
      %662 = vmatprep.subr.bf16.mxu0 0
      %663 = vmatpush1.bf16.msra.mxu0 0
      %664 = vmatprep.subr.bf16.mxu0 0
      %665 = vmatpush1.bf16.msra.mxu0 0
      %666 = vmatprep.subr.bf16.mxu0 0
      %667 = vmatpush1.bf16.msra.mxu0 0
      %668 = vmatprep.subr.bf16.mxu0 0
      %669 = vmatpush1.bf16.msra.mxu0 0
      %670 = vmatprep.subr.bf16.mxu0 0
      %671 = vmatpush1.bf16.msra.mxu0 0
      %672 = vmatprep.subr.bf16.mxu0 0
      %673 = vmatpush1.bf16.msra.mxu0 0
      %674 = vmatprep.mubr.bf16.mxu0 0
      %675 = vmatmul.mubr.bf16.gmra.mrb[0].mxu0 %v580
      %v676 = vpop.f32.mrb[0].mxu0
      %v677 = vadd.f32 %v629, %v676
      %v678 = vpop.f32.mrb[0].mxu0
      %v679 = vpop.f32.mrb[0].mxu0
      %v680 = vpop.f32.mrb[0].mxu0
      %681 = vdwg.mxu0
      %v682 = vmul.f32 %v677, %v329
      %v683 = vmul.f32 %v677, %v369
      %v684 = vmul.f32 %v677, %v409
      %v685 = vxor.u32 %v617, 2147483648
      %v686 = vmul.f32 %v685, 1.442695
      %v687 = vpow.pop %v686
      %v688 = vadd.f32 %v687, 1.0
      %v689 = vrcp.pop %v688
      %v690 = vmul.f32 1.0, %v689
      %v691 = vmul.f32 %v617, %v690
      %v692 = vpack.c.bf16 %v682, %v682
      %v693 = vld [vmem:[%s8] sm:$0xf]
      %v694 = vld [vmem:[%s8 + $0x4] sm:$0xf]
      %v697 = vunpack.c.l.b16 %v693
      %v698 = vunpack.c.l.b16 %v694
      %v699 = vpack.c.b16 %v698, %v697
      %vm701 = vcmask 130048
      %v703 = vsel %vm701, %v692, 0
      %705 = vmatprep.subr.bf16.mxu0 0
      %706 = vmatpush1.bf16.msra.mxu0 %v699
      %707 = vmatprep.subr.bf16.mxu0 0
      %708 = vmatpush1.bf16.msra.mxu0 0
      %709 = vmatprep.subr.bf16.mxu0 0
      %710 = vmatpush1.bf16.msra.mxu0 0
      %711 = vmatprep.subr.bf16.mxu0 0
      %712 = vmatpush1.bf16.msra.mxu0 0
      %713 = vmatprep.subr.bf16.mxu0 0
      %714 = vmatpush1.bf16.msra.mxu0 0
      %715 = vmatprep.subr.bf16.mxu0 0
      %716 = vmatpush1.bf16.msra.mxu0 0
      %717 = vmatprep.subr.bf16.mxu0 0
      %718 = vmatpush1.bf16.msra.mxu0 0
      %719 = vmatprep.subr.bf16.mxu0 0
      %720 = vmatpush1.bf16.msra.mxu0 0
      %721 = vmatprep.subr.bf16.mxu0 0
      %722 = vmatpush1.bf16.msra.mxu0 0
      %723 = vmatprep.subr.bf16.mxu0 0
      %724 = vmatpush1.bf16.msra.mxu0 0
      %725 = vmatprep.subr.bf16.mxu0 0
      %726 = vmatpush1.bf16.msra.mxu0 0
      %727 = vmatprep.subr.bf16.mxu0 0
      %728 = vmatpush1.bf16.msra.mxu0 0
      %729 = vmatprep.subr.bf16.mxu0 0
      %730 = vmatpush1.bf16.msra.mxu0 0
      %731 = vmatprep.subr.bf16.mxu0 0
      %732 = vmatpush1.bf16.msra.mxu0 0
      %733 = vmatprep.subr.bf16.mxu0 0
      %734 = vmatpush1.bf16.msra.mxu0 0
      %735 = vmatprep.subr.bf16.mxu0 0
      %736 = vmatpush1.bf16.msra.mxu0 0
      %737 = vmatprep.mubr.bf16.mxu0 0
      %738 = vmatmul.mubr.bf16.gmra.mrb[0].mxu0 %v703
      %v739 = vpop.f32.mrb[0].mxu0
      %v740 = vadd.f32 0.0, %v739
      %v741 = vpop.f32.mrb[0].mxu0
      %v742 = vpop.f32.mrb[0].mxu0
      %v743 = vpop.f32.mrb[0].mxu0
      %744 = vdwg.mxu0
      %v745 = vpack.c.bf16 %v683, %v683
      %v747 = vsel %vm701, %v745, 0
      %749 = vmatprep.subr.bf16.mxu0 0
      %750 = vmatpush1.bf16.msra.mxu0 %v699
      %751 = vmatprep.subr.bf16.mxu0 0
      %752 = vmatpush1.bf16.msra.mxu0 0
      %753 = vmatprep.subr.bf16.mxu0 0
      %754 = vmatpush1.bf16.msra.mxu0 0
      %755 = vmatprep.subr.bf16.mxu0 0
      %756 = vmatpush1.bf16.msra.mxu0 0
      %757 = vmatprep.subr.bf16.mxu0 0
      %758 = vmatpush1.bf16.msra.mxu0 0
      %759 = vmatprep.subr.bf16.mxu0 0
      %760 = vmatpush1.bf16.msra.mxu0 0
      %761 = vmatprep.subr.bf16.mxu0 0
      %762 = vmatpush1.bf16.msra.mxu0 0
      %763 = vmatprep.subr.bf16.mxu0 0
      %764 = vmatpush1.bf16.msra.mxu0 0
      %765 = vmatprep.subr.bf16.mxu0 0
      %766 = vmatpush1.bf16.msra.mxu0 0
      %767 = vmatprep.subr.bf16.mxu0 0
      %768 = vmatpush1.bf16.msra.mxu0 0
      %769 = vmatprep.subr.bf16.mxu0 0
      %770 = vmatpush1.bf16.msra.mxu0 0
      %771 = vmatprep.subr.bf16.mxu0 0
      %772 = vmatpush1.bf16.msra.mxu0 0
      %773 = vmatprep.subr.bf16.mxu0 0
      %774 = vmatpush1.bf16.msra.mxu0 0
      %775 = vmatprep.subr.bf16.mxu0 0
      %776 = vmatpush1.bf16.msra.mxu0 0
      %777 = vmatprep.subr.bf16.mxu0 0
      %778 = vmatpush1.bf16.msra.mxu0 0
      %779 = vmatprep.subr.bf16.mxu0 0
      %780 = vmatpush1.bf16.msra.mxu0 0
      %781 = vmatprep.mubr.bf16.mxu0 0
      %782 = vmatmul.mubr.bf16.gmra.mrb[0].mxu0 %v747
      %v783 = vpop.f32.mrb[0].mxu0
      %v784 = vadd.f32 0.0, %v783
      %v785 = vpop.f32.mrb[0].mxu0
      %v786 = vpop.f32.mrb[0].mxu0
      %v787 = vpop.f32.mrb[0].mxu0
      %788 = vdwg.mxu0
      %v789 = vpack.c.bf16 %v684, %v684
      %v791 = vsel %vm701, %v789, 0
      %793 = vmatprep.subr.bf16.mxu0 0
      %794 = vmatpush1.bf16.msra.mxu0 %v699
      %795 = vmatprep.subr.bf16.mxu0 0
      %796 = vmatpush1.bf16.msra.mxu0 0
      %797 = vmatprep.subr.bf16.mxu0 0
      %798 = vmatpush1.bf16.msra.mxu0 0
      %799 = vmatprep.subr.bf16.mxu0 0
      %800 = vmatpush1.bf16.msra.mxu0 0
      %801 = vmatprep.subr.bf16.mxu0 0
      %802 = vmatpush1.bf16.msra.mxu0 0
      %803 = vmatprep.subr.bf16.mxu0 0
      %804 = vmatpush1.bf16.msra.mxu0 0
      %805 = vmatprep.subr.bf16.mxu0 0
      %806 = vmatpush1.bf16.msra.mxu0 0
      %807 = vmatprep.subr.bf16.mxu0 0
      %808 = vmatpush1.bf16.msra.mxu0 0
      %809 = vmatprep.subr.bf16.mxu0 0
      %810 = vmatpush1.bf16.msra.mxu0 0
      %811 = vmatprep.subr.bf16.mxu0 0
      %812 = vmatpush1.bf16.msra.mxu0 0
      %813 = vmatprep.subr.bf16.mxu0 0
      %814 = vmatpush1.bf16.msra.mxu0 0
      %815 = vmatprep.subr.bf16.mxu0 0
      %816 = vmatpush1.bf16.msra.mxu0 0
      %817 = vmatprep.subr.bf16.mxu0 0
      %818 = vmatpush1.bf16.msra.mxu0 0
      %819 = vmatprep.subr.bf16.mxu0 0
      %820 = vmatpush1.bf16.msra.mxu0 0
      %821 = vmatprep.subr.bf16.mxu0 0
      %822 = vmatpush1.bf16.msra.mxu0 0
      %823 = vmatprep.subr.bf16.mxu0 0
      %824 = vmatpush1.bf16.msra.mxu0 0
      %825 = vmatprep.mubr.bf16.mxu0 0
      %826 = vmatmul.mubr.bf16.gmra.mrb[0].mxu0 %v791
      %v827 = vpop.f32.mrb[0].mxu0
      %v828 = vadd.f32 0.0, %v827
      %v829 = vpop.f32.mrb[0].mxu0
      %v830 = vpop.f32.mrb[0].mxu0
      %v831 = vpop.f32.mrb[0].mxu0
      %832 = vdwg.mxu0
      %v833 = vmul.f32 %v740, %v740
      %v834 = vmul.f32 %v784, %v784
      %v835 = vadd.f32 %v833, %v834
      %v836 = vmul.f32 %v828, %v828
      %v837 = vadd.f32 %v835, %v836
      %v838 = vrsqrt.pop %v837
      %v839 = vmul.f32 %v837, %v838
      %vm840 = vcmp.eq.f32.partialorder %v837, inf
      %v841 = vsel %vm840, %v837, %v839
      %vm842 = vcmp.eq.f32.partialorder %v837, 0.0
      %v843 = vand.u32 %v837, 2147483648
      %v844 = vsel %vm842, %v843, %v841
      %v845 = vpack.c.bf16 %v691, %v691
      %v846 = vld [vmem:[%s10] sm:$0xf]
      %v847 = vld [vmem:[%s10 + $0x4] sm:$0xf]
      %v848 = vpack.c.bf16 %v844, %v844
      %v849 = vld [vmem:[%s11] sm:$0xf]
      %v850 = vld [vmem:[%s11 + $0x4] sm:$0xf]
      %v853 = vunpack.c.l.b16 %v849
      %v854 = vunpack.c.l.b16 %v850
      %v855 = vpack.c.b16 %v854, %v853
      %v858 = vsel %vm701, %v848, 0
      %860 = vmatprep.subr.bf16.mxu0 0
      %861 = vmatpush1.bf16.msra.mxu0 %v855
      %862 = vmatprep.subr.bf16.mxu0 0
      %863 = vmatpush1.bf16.msra.mxu0 0
      %864 = vmatprep.subr.bf16.mxu0 0
      %865 = vmatpush1.bf16.msra.mxu0 0
      %866 = vmatprep.subr.bf16.mxu0 0
      %867 = vmatpush1.bf16.msra.mxu0 0
      %868 = vmatprep.subr.bf16.mxu0 0
      %869 = vmatpush1.bf16.msra.mxu0 0
      %870 = vmatprep.subr.bf16.mxu0 0
      %871 = vmatpush1.bf16.msra.mxu0 0
      %872 = vmatprep.subr.bf16.mxu0 0
      %873 = vmatpush1.bf16.msra.mxu0 0
      %874 = vmatprep.subr.bf16.mxu0 0
      %875 = vmatpush1.bf16.msra.mxu0 0
      %876 = vmatprep.subr.bf16.mxu0 0
      %877 = vmatpush1.bf16.msra.mxu0 0
      %878 = vmatprep.subr.bf16.mxu0 0
      %879 = vmatpush1.bf16.msra.mxu0 0
      %880 = vmatprep.subr.bf16.mxu0 0
      %881 = vmatpush1.bf16.msra.mxu0 0
      %882 = vmatprep.subr.bf16.mxu0 0
      %883 = vmatpush1.bf16.msra.mxu0 0
      %884 = vmatprep.subr.bf16.mxu0 0
      %885 = vmatpush1.bf16.msra.mxu0 0
      %886 = vmatprep.subr.bf16.mxu0 0
      %887 = vmatpush1.bf16.msra.mxu0 0
      %888 = vmatprep.subr.bf16.mxu0 0
      %889 = vmatpush1.bf16.msra.mxu0 0
      %890 = vmatprep.subr.bf16.mxu0 0
      %891 = vmatpush1.bf16.msra.mxu0 0
      %892 = vmatprep.mubr.bf16.mxu0 0
      %893 = vmatmul.mubr.bf16.gmra.mrb[0].mxu0 %v858
      %v894 = vpop.f32.mrb[0].mxu0
      %v895 = vadd.f32 0.0, %v894
      %v896 = vpop.f32.mrb[0].mxu0
      %v897 = vpop.f32.mrb[0].mxu0
      %v898 = vpop.f32.mrb[0].mxu0
      %899 = vdwg.mxu0
      %v902 = vunpack.c.l.b16 %v846
      %v903 = vunpack.c.l.b16 %v847
      %v904 = vpack.c.b16 %v903, %v902
      %v907 = vsel %vm701, %v845, 0
      %909 = vmatprep.subr.bf16.mxu0 0
      %910 = vmatpush1.bf16.msra.mxu0 %v904
      %911 = vmatprep.subr.bf16.mxu0 0
      %912 = vmatpush1.bf16.msra.mxu0 0
      %913 = vmatprep.subr.bf16.mxu0 0
      %914 = vmatpush1.bf16.msra.mxu0 0
      %915 = vmatprep.subr.bf16.mxu0 0
      %916 = vmatpush1.bf16.msra.mxu0 0
      %917 = vmatprep.subr.bf16.mxu0 0
      %918 = vmatpush1.bf16.msra.mxu0 0
      %919 = vmatprep.subr.bf16.mxu0 0
      %920 = vmatpush1.bf16.msra.mxu0 0
      %921 = vmatprep.subr.bf16.mxu0 0
      %922 = vmatpush1.bf16.msra.mxu0 0
      %923 = vmatprep.subr.bf16.mxu0 0
      %924 = vmatpush1.bf16.msra.mxu0 0
      %925 = vmatprep.subr.bf16.mxu0 0
      %926 = vmatpush1.bf16.msra.mxu0 0
      %927 = vmatprep.subr.bf16.mxu0 0
      %928 = vmatpush1.bf16.msra.mxu0 0
      %929 = vmatprep.subr.bf16.mxu0 0
      %930 = vmatpush1.bf16.msra.mxu0 0
      %931 = vmatprep.subr.bf16.mxu0 0
      %932 = vmatpush1.bf16.msra.mxu0 0
      %933 = vmatprep.subr.bf16.mxu0 0
      %934 = vmatpush1.bf16.msra.mxu0 0
      %935 = vmatprep.subr.bf16.mxu0 0
      %936 = vmatpush1.bf16.msra.mxu0 0
      %937 = vmatprep.subr.bf16.mxu0 0
      %938 = vmatpush1.bf16.msra.mxu0 0
      %939 = vmatprep.subr.bf16.mxu0 0
      %940 = vmatpush1.bf16.msra.mxu0 0
      %941 = vmatprep.mubr.bf16.mxu0 0
      %942 = vmatmul.mubr.bf16.gmra.mrb[0].mxu0 %v907
      %v943 = vpop.f32.mrb[0].mxu0
      %v944 = vadd.f32 %v895, %v943
      %v945 = vpop.f32.mrb[0].mxu0
      %v946 = vpop.f32.mrb[0].mxu0
      %v947 = vpop.f32.mrb[0].mxu0
      %948 = vdwg.mxu0
      %v949 = vlaneseq
      %v950 = vshrl.u32 %v949, 7
      %v951 = vsub.s32 3, %v950
      %v952 = vrot.slane %v124, %v951
      %v953 = vadd.f32 %v944, %v952
      %v954 = vxor.u32 %v953, 2147483648
      %v955 = vmul.f32 %v954, 1.442695
      %v956 = vpow.pop %v955
      %v957 = vadd.f32 %v956, 1.0
      %v958 = vrcp.pop %v957
      %v959 = vmul.f32 1.0, %v958
      %v960 = vmul.f32 %v953, %v959
      %v961 = vpack.c.bf16 %v960, %v960
      %v962 = vld [vmem:[%s12] sm:$0xf]
      %v963 = vld [vmem:[%s12 + $0x4] sm:$0xf]
      %v964 = vlaneseq
      %v965 = vshrl.u32 %v964, 7
      %v966 = vsub.s32 4, %v965
      %v967 = vrot.slane %v124, %v966
      %v970 = vunpack.c.l.b16 %v962
      %v971 = vunpack.c.l.b16 %v963
      %v972 = vpack.c.b16 %v971, %v970
      %v975 = vsel %vm701, %v961, 0
      %977 = vmatprep.subr.bf16.mxu0 0
      %978 = vmatpush1.bf16.msra.mxu0 %v972
      %979 = vmatprep.subr.bf16.mxu0 0
      %980 = vmatpush1.bf16.msra.mxu0 0
      %981 = vmatprep.subr.bf16.mxu0 0
      %982 = vmatpush1.bf16.msra.mxu0 0
      %983 = vmatprep.subr.bf16.mxu0 0
      %984 = vmatpush1.bf16.msra.mxu0 0
      %985 = vmatprep.subr.bf16.mxu0 0
      %986 = vmatpush1.bf16.msra.mxu0 0
      %987 = vmatprep.subr.bf16.mxu0 0
      %988 = vmatpush1.bf16.msra.mxu0 0
      %989 = vmatprep.subr.bf16.mxu0 0
      %990 = vmatpush1.bf16.msra.mxu0 0
      %991 = vmatprep.subr.bf16.mxu0 0
      %992 = vmatpush1.bf16.msra.mxu0 0
      %993 = vmatprep.subr.bf16.mxu0 0
      %994 = vmatpush1.bf16.msra.mxu0 0
      %995 = vmatprep.subr.bf16.mxu0 0
      %996 = vmatpush1.bf16.msra.mxu0 0
      %997 = vmatprep.subr.bf16.mxu0 0
      %998 = vmatpush1.bf16.msra.mxu0 0
      %999 = vmatprep.subr.bf16.mxu0 0
      %1000 = vmatpush1.bf16.msra.mxu0 0
      %1001 = vmatprep.subr.bf16.mxu0 0
      %1002 = vmatpush1.bf16.msra.mxu0 0
      %1003 = vmatprep.subr.bf16.mxu0 0
      %1004 = vmatpush1.bf16.msra.mxu0 0
      %1005 = vmatprep.subr.bf16.mxu0 0
      %1006 = vmatpush1.bf16.msra.mxu0 0
      %1007 = vmatprep.subr.bf16.mxu0 0
      %1008 = vmatpush1.bf16.msra.mxu0 0
      %1009 = vmatprep.mubr.bf16.mxu0 0
      %1010 = vmatmul.mubr.bf16.gmra.mrb[0].mxu0 %v975
      %v1011 = vpop.f32.mrb[0].mxu0
      %v1012 = vadd.f32 %v967, %v1011
      %v1013 = vpop.f32.mrb[0].mxu0
      %v1014 = vpop.f32.mrb[0].mxu0
      %v1015 = vpop.f32.mrb[0].mxu0
      %1016 = vdwg.mxu0
      %v1017 = vpack.c.bf16 %v1012, %v1012
      %v1018 = vld [vmem:[%s14] sm:$0xf]
      %v1019 = vld [vmem:[%s14 + $0x4] sm:$0xf]
      %v1020 = vld [vmem:[%s14 + $0x8] sm:$0xf]
      %v1021 = vld [vmem:[%s14 + $0xc] sm:$0xf]
      %v1022 = vlaneseq
      %v1023 = vshrl.u32 %v1022, 7
      %v1024 = vsub.s32 6, %v1023
      %v1025 = vrot.slane %v124, %v1024
      %v1030 = vunpack.c.l.b16 %v1018
      %v1031 = vunpack.c.l.b16 %v1019
      %v1032 = vunpack.c.l.b16 %v1020
      %v1033 = vunpack.c.l.b16 %v1021
      %v1034 = vpack.c.b16 %v1031, %v1030
      %v1035 = vpack.c.b16 %v1033, %v1032
      %v1039 = vsel %vm73, %v1017, 0
      %1041 = vmatprep.subr.bf16.mxu0 0
      %1042 = vmatpush1.bf16.msra.mxu0 %v1034
      %1043 = vmatprep.subr.bf16.mxu0 0
      %1044 = vmatpush1.bf16.msra.mxu0 %v1035
      %1045 = vmatprep.subr.bf16.mxu0 0
      %1046 = vmatpush1.bf16.msra.mxu0 0
      %1047 = vmatprep.subr.bf16.mxu0 0
      %1048 = vmatpush1.bf16.msra.mxu0 0
      %1049 = vmatprep.subr.bf16.mxu0 0
      %1050 = vmatpush1.bf16.msra.mxu0 0
      %1051 = vmatprep.subr.bf16.mxu0 0
      %1052 = vmatpush1.bf16.msra.mxu0 0
      %1053 = vmatprep.subr.bf16.mxu0 0
      %1054 = vmatpush1.bf16.msra.mxu0 0
      %1055 = vmatprep.subr.bf16.mxu0 0
      %1056 = vmatpush1.bf16.msra.mxu0 0
      %1057 = vmatprep.subr.bf16.mxu0 0
      %1058 = vmatpush1.bf16.msra.mxu0 0
      %1059 = vmatprep.subr.bf16.mxu0 0
      %1060 = vmatpush1.bf16.msra.mxu0 0
      %1061 = vmatprep.subr.bf16.mxu0 0
      %1062 = vmatpush1.bf16.msra.mxu0 0
      %1063 = vmatprep.subr.bf16.mxu0 0
      %1064 = vmatpush1.bf16.msra.mxu0 0
      %1065 = vmatprep.subr.bf16.mxu0 0
      %1066 = vmatpush1.bf16.msra.mxu0 0
      %1067 = vmatprep.subr.bf16.mxu0 0
      %1068 = vmatpush1.bf16.msra.mxu0 0
      %1069 = vmatprep.subr.bf16.mxu0 0
      %1070 = vmatpush1.bf16.msra.mxu0 0
      %1071 = vmatprep.subr.bf16.mxu0 0
      %1072 = vmatpush1.bf16.msra.mxu0 0
      %1073 = vmatprep.mubr.bf16.mxu0 0
      %1074 = vmatmul.mubr.bf16.gmra.mrb[0].mxu0 %v1039
      %v1075 = vpop.f32.mrb[0].mxu0
      %v1076 = vadd.f32 %v1025, %v1075
      %v1077 = vpop.f32.mrb[0].mxu0
      %v1078 = vpop.f32.mrb[0].mxu0
      %v1079 = vpop.f32.mrb[0].mxu0
      %1080 = vdwg.mxu0
      %v1081 = vxor.u32 %v1076, 2147483648
      %v1082 = vmul.f32 %v1081, 1.442695
      %v1083 = vpow.pop %v1082
      %v1084 = vadd.f32 %v1083, 1.0
      %v1085 = vrcp.pop %v1084
      %v1086 = vmul.f32 1.0, %v1085
      %v1087 = vmul.f32 %v1076, %v1086
      %v1088 = vpack.c.bf16 %v1087, %v1087
      %v1089 = vld [vmem:[%s15] sm:$0xf]
      %v1090 = vld [vmem:[%s15 + $0x4] sm:$0xf]
      %v1091 = vld [vmem:[%s15 + $0x8] sm:$0xf]
      %v1092 = vld [vmem:[%s15 + $0xc] sm:$0xf]
      %v1093 = vlaneseq
      %v1094 = vshrl.u32 %v1093, 7
      %v1095 = vsub.s32 7, %v1094
      %v1096 = vrot.slane %v124, %v1095
      %v1101 = vunpack.c.l.b16 %v1089
      %v1102 = vunpack.c.l.b16 %v1090
      %v1103 = vunpack.c.l.b16 %v1091
      %v1104 = vunpack.c.l.b16 %v1092
      %v1105 = vpack.c.b16 %v1102, %v1101
      %v1106 = vpack.c.b16 %v1104, %v1103
      %v1110 = vsel %vm73, %v1088, 0
      %1112 = vmatprep.subr.bf16.mxu0 0
      %1113 = vmatpush1.bf16.msra.mxu0 %v1105
      %1114 = vmatprep.subr.bf16.mxu0 0
      %1115 = vmatpush1.bf16.msra.mxu0 %v1106
      %1116 = vmatprep.subr.bf16.mxu0 0
      %1117 = vmatpush1.bf16.msra.mxu0 0
      %1118 = vmatprep.subr.bf16.mxu0 0
      %1119 = vmatpush1.bf16.msra.mxu0 0
      %1120 = vmatprep.subr.bf16.mxu0 0
      %1121 = vmatpush1.bf16.msra.mxu0 0
      %1122 = vmatprep.subr.bf16.mxu0 0
      %1123 = vmatpush1.bf16.msra.mxu0 0
      %1124 = vmatprep.subr.bf16.mxu0 0
      %1125 = vmatpush1.bf16.msra.mxu0 0
      %1126 = vmatprep.subr.bf16.mxu0 0
      %1127 = vmatpush1.bf16.msra.mxu0 0
      %1128 = vmatprep.subr.bf16.mxu0 0
      %1129 = vmatpush1.bf16.msra.mxu0 0
      %1130 = vmatprep.subr.bf16.mxu0 0
      %1131 = vmatpush1.bf16.msra.mxu0 0
      %1132 = vmatprep.subr.bf16.mxu0 0
      %1133 = vmatpush1.bf16.msra.mxu0 0
      %1134 = vmatprep.subr.bf16.mxu0 0
      %1135 = vmatpush1.bf16.msra.mxu0 0
      %1136 = vmatprep.subr.bf16.mxu0 0
      %1137 = vmatpush1.bf16.msra.mxu0 0
      %1138 = vmatprep.subr.bf16.mxu0 0
      %1139 = vmatpush1.bf16.msra.mxu0 0
      %1140 = vmatprep.subr.bf16.mxu0 0
      %1141 = vmatpush1.bf16.msra.mxu0 0
      %1142 = vmatprep.subr.bf16.mxu0 0
      %1143 = vmatpush1.bf16.msra.mxu0 0
      %1144 = vmatprep.mubr.bf16.mxu0 0
      %1145 = vmatmul.mubr.bf16.gmra.mrb[0].mxu0 %v1110
      %v1146 = vpop.f32.mrb[0].mxu0
      %v1147 = vadd.f32 %v1096, %v1146
      %v1148 = vpop.f32.mrb[0].mxu0
      %v1149 = vpop.f32.mrb[0].mxu0
      %v1150 = vpop.f32.mrb[0].mxu0
      %1151 = vdwg.mxu0
      %vm1152 = vcmask 25600
      %1153 = vst.msk [vmem:[#allocation4] sm:$0x3] %vm1152, %v1147
    $region77: #{otf_lobe_forward.1} parent=1 // pred_fallthru
      _
    // Predicated region
    $region78: #{otf_lobe_forward.1} parent=1 // pred_check
      _
    $region79: #{otf_lobe_forward.1} parent=1 // pred_check_branch
      %1155 = sbr.rel (0) target = $region81
    $region80: #{otf_lobe_forward.1} parent=1 // pred_region
      %s1157 = ssub.s32 32, 32
      %1158 = vsyncadd [#allocation5], %s1157
      %s1160 = sshll.u32 [#allocation4], 4
      %s1161 = int_to_ptr.vmem [resolvable:$true] %s1160
      %1163 = dma.vmem_to_hbm [thread:$0]  %s1161, 32, %s17, [#allocation5]
    $region81: #{otf_lobe_forward.1} parent=1 // pred_fallthru
      _
    // Predicated region
    $region82: #{otf_lobe_forward.1} parent=1 // pred_check
      _
    $region83: #{otf_lobe_forward.1} parent=1 // pred_check_branch
      %1165 = sbr.rel (0) target = $region85
    $region84: #{otf_lobe_forward.1} parent=1 // pred_region
      %1166 = dma.done [#allocation5], 32
    $region85: #{otf_lobe_forward.1} parent=1 // pred_fallthru
      _
    %1167 = vsyncpa [#allocation5], 1

</llo_original>
